<compile_context>
chip_gen: v7x
topology: tpu7x:2x2x1
jax: 0.10.0
libtpu: 0.0.40
codegen_flags: <defaults>
</compile_context>

<pallas_src>
import functools

import numpy as np
import jax
import jax.numpy as jnp
from jax import lax
from jax.experimental import pallas as pl
from jax.experimental.pallas import tpu as pltpu


def _pair(v):
    return (v, v) if isinstance(v, int) else tuple(v)


def _conv_kernel(x_ref, w_ref, o_ref, *, KW, n_taps, Wp, RTL, RPH,
                 dh, dw, sh, groups, cin_g, cout_g):
    """One (image, row-tile) grid step.

    x_ref : (1, 1, Cin, SLAB)      phase-major, halo'd input slab for this tile
    w_ref : (KH*KW, Cout, cin_g)   per-tap weight matrices
    o_ref : (1, 1, Cout, RTL)      RTL = RT * Wp lane-dense output rows
    """
    for g in range(groups):
        c0 = g * cin_g
        o0 = g * cout_g

        def tap(t, acc):
            kh = t // KW
            kw = t % KW
            hh = kh * dh
            # Phase-major slab: phase p = hh % sh holds input rows == p (mod sh),
            # so every tap is one contiguous flat slab of length RT*Wp.
            base = ((hh % sh) * RPH + hh // sh) * Wp + kw * dw
            xs = x_ref[0, 0, c0:c0 + cin_g, pl.ds(base, RTL)]
            wt = w_ref[t][o0:o0 + cout_g, :]
            return acc + jnp.dot(wt, xs, preferred_element_type=jnp.float32)

        acc = jnp.zeros((cout_g, RTL), jnp.float32)
        if n_taps <= 16:                       # small kernels: static unroll
            for t in range(n_taps):
                acc = tap(t, acc)
        else:                                  # bound trace-time unrolling
            acc = lax.fori_loop(0, n_taps, tap, acc)
        o_ref[0, 0, o0:o0 + cout_g, :] = acc.astype(o_ref.dtype)


def _choose_row_tile(OH, Wp, Cin, Cout, sh, qmax, tail, itemsize,
                     budget_bytes=12 << 20):
    """Largest RT (output rows per grid step) whose double-buffered blocks fit."""
    best = 1
    for rt in range(1, OH + 1):
        slab = sh * (rt + qmax) * Wp + tail
        step = 2 * (Cin * slab + Cout * rt * Wp) * itemsize
        if step <= budget_bytes:
            best = rt
        else:
            break
    t = -(-OH // best)
    return -(-OH // t)            # re-balance so tiles are even-sized


def deform_conv2d(x, weight, stride=1, padding=0, dilation=1, groups=1,
                  *, row_tile=None, vmem_budget_bytes=12 << 20):
    """Forward of DeformConv2d (a plain grouped conv2d, no bias).

    x      : (N, Cin, H, W)                -- NCHW
    weight : (Cout, Cin//groups, KH, KW)   -- OIHW
    """
    stride = _pair(stride)
    padding = _pair(padding)
    dilation = _pair(dilation)
    N, Cin, H, W = x.shape
    Cout, cin_g, KH, KW = weight.shape
    assert Cin % groups == 0 and Cout % groups == 0
    assert cin_g == Cin // groups
    cout_g = Cout // groups

    sh, sw = stride
    ph, pw = padding
    dh, dw = dilation
    eff_kh = dh * (KH - 1) + 1
    eff_kw = dw * (KW - 1) + 1

    # Module semantics: if spatial < kernel, right/bottom pre-pad the input and
    # crop the output by the same amounts afterwards.
    extra_h = max(KH - H, 0)
    extra_w = max(KW - W, 0)
    input_pad = extra_h > 0 or extra_w > 0

    Hp = H + extra_h + 2 * ph
    Wp = W + extra_w + 2 * pw
    OH = (Hp - eff_kh) // sh + 1
    OW = (Wp - eff_kw) // sw + 1
    if OH <= 0 or OW <= 0:
        raise ValueError("convolution input is too small")

    qmax = ((KH - 1) * dh) // sh        # extra halo rows per phase
    tail = eff_kw - 1                   # right over-run of the last tap
    itemsize = jnp.dtype(x.dtype).itemsize

    RT = _choose_row_tile(OH, Wp, Cin, Cout, sh, qmax, tail, itemsize,
                          vmem_budget_bytes)
    if row_tile is not None:
        RT = max(1, min(int(row_tile), OH))
    T = -(-OH // RT)                    # number of row tiles per image
    OH_pad = T * RT
    RPH = RT + qmax                     # rows per phase in one tile's slab
    SLAB = sh * RPH * Wp + tail         # flat slab length per channel
    RTL = RT * Wp                       # lane width of one output block

    # ---- wrapper-side layout plumbing (one extra pass over the input) ------
    xpad = jnp.pad(x, ((0, 0), (0, 0),
                       (ph, ph + extra_h), (pw, pw + extra_w)))
    if sh == 1 and T == 1:
        # RPH == Hp: the single tile is exactly the padded image (no gather).
        xg = xpad.reshape(N, 1, Cin, Hp * Wp)
    else:
        # Per-tile, phase-major, halo'd row slabs (duplication is only the
        # qmax halo rows per tile).
        h_need = (OH_pad + qmax) * sh
        if h_need > Hp:
            xpad = jnp.pad(xpad, ((0, 0), (0, 0), (0, h_need - Hp), (0, 0)))
        t_i = np.arange(T)[:, None, None]
        p_i = np.arange(sh)[None, :, None]
        r_i = np.arange(RPH)[None, None, :]
        rows = jnp.asarray((t_i * RT + r_i) * sh + p_i)      # (T, sh, RPH)
        xg = xpad[:, :, rows, :]                             # (N,Cin,T,sh,RPH,Wp)
        xg = jnp.transpose(xg, (0, 2, 1, 3, 4, 5))
        xg = xg.reshape(N, T, Cin, sh * RPH * Wp)
    if SLAB > xg.shape[-1]:
        xg = jnp.pad(xg, ((0, 0), (0, 0), (0, 0), (0, SLAB - xg.shape[-1])))

    # Per-tap weight matrices: (KH*KW, Cout, cin_g); cast like the module does.
    wk = jnp.transpose(weight, (2, 3, 0, 1)).reshape(KH * KW, Cout, cin_g)
    wk = wk.astype(x.dtype)

    kernel = functools.partial(
        _conv_kernel, KW=KW, n_taps=KH * KW, Wp=Wp, RTL=RTL, RPH=RPH,
        dh=dh, dw=dw, sh=sh, groups=groups, cin_g=cin_g, cout_g=cout_g)

    # Explicit VMEM limit (v5e scoped default is 16 MiB; v7x physical 64 MiB).
    def _r(v, m):
        return -(-v // m) * m
    blk_bytes = (_r(Cin, 8) * _r(SLAB, 128)          # input block
                 + _r(Cout, 8) * _r(RTL, 128)        # output block
                 + KH * KW * _r(Cout, 8) * _r(cin_g, 128)) * itemsize
    vmem_limit = int(max(32 << 20, min(100 << 20, 2 * blk_bytes + (8 << 20))))

    cost = pl.CostEstimate(
        flops=2 * N * T * RTL * Cout * cin_g * KH * KW,
        transcendentals=0,
        bytes_accessed=(xg.size + wk.size + N * T * Cout * RTL) * itemsize)

    out = pl.pallas_call(
        kernel,
        out_shape=jax.ShapeDtypeStruct((N, T, Cout, RTL), x.dtype),
        grid_spec=pltpu.PrefetchScalarGridSpec(
            num_scalar_prefetch=0,
            grid=(N, T),
            in_specs=[
                pl.BlockSpec((1, 1, Cin, SLAB), lambda n, t: (n, t, 0, 0)),
                # Constant block index -> the weight is DMA'd only once.
                pl.BlockSpec((KH * KW, Cout, cin_g), lambda n, t: (0, 0, 0)),
            ],
            out_specs=pl.BlockSpec((1, 1, Cout, RTL), lambda n, t: (n, t, 0, 0)),
        ),
        compiler_params=pltpu.CompilerParams(
            dimension_semantics=("parallel", "parallel"),
            vmem_limit_bytes=vmem_limit),
        cost_estimate=cost,
    )(xg, wk)

    # (N, T, Cout, RT*Wp) -> NCHW; drop padded rows, over-computed width
    # columns, and apply the width stride (height stride was done in-kernel).
    out = out.reshape(N, T, Cout, RT, Wp)
    out = jnp.transpose(out, (0, 2, 1, 3, 4)).reshape(N, Cout, OH_pad, Wp)
    out = out[:, :, :OH, 0:(OW - 1) * sw + 1:sw]

    if input_pad:
        out = out[:, :, :OH - extra_h, :OW - extra_w]
    return out


if __name__ == "__main__":
    def _ref_conv(x, w, stride, padding, dilation, groups):
        return jax.lax.conv_general_dilated(
            x, w, window_strides=_pair(stride),
            padding=[_pair(padding), _pair(padding)],
            rhs_dilation=_pair(dilation),
            dimension_numbers=("NCHW", "OIHW", "NCHW"),
            feature_group_count=groups)

    key = jax.random.PRNGKey(0)
    k1, k2, k3, k4 = jax.random.split(key, 4)

    # Module config: DeformConv2d(in_channels=4, out_channels=8, kernel_size=3,
    #                             stride=1, padding=1, dilation=1, groups=1,
    #                             bias=False);  x: (2, 4, 16, 16)
    x = jax.random.normal(k1, (2, 4, 16, 16), dtype=jnp.float32)
    w = jax.random.normal(k2, (8, 4, 3, 3), dtype=jnp.float32)
    out = jax.block_until_ready(deform_conv2d(x, w, stride=1, padding=1,
                                              dilation=1, groups=1))
    ref = _ref_conv(x, w, 1, 1, 1, 1)
    assert out.shape == ref.shape, (out.shape, ref.shape)
    assert jnp.allclose(out, ref, atol=1e-4, rtol=1e-4), float(
        jnp.max(jnp.abs(out - ref)))

    # Extra coverage: strided + grouped config with a forced multi-tile grid
    # (exercises the phase-major slab layout and the (N, T) row tiling).
    xs = jax.random.normal(k3, (2, 4, 16, 16), dtype=jnp.float32)
    ws = jax.random.normal(k4, (8, 2, 3, 3), dtype=jnp.float32)
    outs = jax.block_until_ready(
        deform_conv2d(xs, ws, stride=2, padding=1, dilation=1, groups=2,
                      row_tile=3))
    refs = _ref_conv(xs, ws, 2, 1, 1, 2)
    assert outs.shape == refs.shape, (outs.shape, refs.shape)
    assert jnp.allclose(outs, refs, atol=1e-4, rtol=1e-4), float(
        jnp.max(jnp.abs(outs - refs)))

    print("KERNEL_OK")
</pallas_src>

<mosaic_0001>
module attributes {stable_mosaic.version = 11 : i64} {
  func.func @_conv_kernel(%arg0: i32, %arg1: i32, %arg2: memref<1x1x4x326xf32, #tpu.memory_space<vmem>>, %arg3: memref<9x8x4xf32, #tpu.memory_space<vmem>>, %arg4: memref<1x1x8x288xf32, #tpu.memory_space<vmem>>) attributes {dimension_semantics = [#tpu.dimension_semantics<parallel>, #tpu.dimension_semantics<parallel>], iteration_bounds = array<i64: 2, 1>, scalar_prefetch = 0 : i64, scratch_operands = 0 : i64, tpu.core_type = #tpu.core_type<tc>, window_params = [{transform_indices = @transform_0, window_bounds = array<i64: 1, 1, 4, 326>}, {pipeline_mode = #tpu.pipeline_mode<synchronous>, transform_indices = @transform_1, window_bounds = array<i64: 9, 8, 4>}, {transform_indices = @transform_2, window_bounds = array<i64: 1, 1, 8, 288>}]} {
    %cst = arith.constant 0.000000e+00 : f32
    %0 = vector.broadcast %cst : f32 to vector<8x288xf32>
    %c0 = arith.constant 0 : index
    %c0_0 = arith.constant 0 : index
    %c0_1 = arith.constant 0 : index
    %c0_2 = arith.constant 0 : index
    %1 = vector.load %arg2[%c0, %c0_0, %c0_1, %c0_2] : memref<1x1x4x326xf32, #tpu.memory_space<vmem>>, vector<1x1x4x288xf32>
    %2 = vector.shape_cast %1 : vector<1x1x4x288xf32> to vector<4x288xf32>
    %c0_3 = arith.constant 0 : index
    %c0_4 = arith.constant 0 : index
    %c0_5 = arith.constant 0 : index
    %3 = vector.load %arg3[%c0_3, %c0_4, %c0_5] : memref<9x8x4xf32, #tpu.memory_space<vmem>>, vector<1x8x4xf32>
    %4 = vector.shape_cast %3 : vector<1x8x4xf32> to vector<8x4xf32>
    %cst_6 = arith.constant dense<0.000000e+00> : vector<8x288xf32>
    %5 = tpu.matmul %4, %2, %cst_6 {dimension_numbers = #tpu.dot_dimension_numbers<[1], [0], [0], [1], [0, 0, 1, 1], [], []>} : vector<8x4xf32>, vector<4x288xf32>, vector<8x288xf32> -> vector<8x288xf32>
    %6 = arith.addf %0, %5 : vector<8x288xf32>
    %c0_7 = arith.constant 0 : index
    %c0_8 = arith.constant 0 : index
    %c0_9 = arith.constant 0 : index
    %c1 = arith.constant 1 : index
    %7 = vector.load %arg2[%c0_7, %c0_8, %c0_9, %c1] : memref<1x1x4x326xf32, #tpu.memory_space<vmem>>, vector<1x1x4x288xf32>
    %8 = vector.shape_cast %7 : vector<1x1x4x288xf32> to vector<4x288xf32>
    %c1_10 = arith.constant 1 : index
    %c0_11 = arith.constant 0 : index
    %c0_12 = arith.constant 0 : index
    %9 = vector.load %arg3[%c1_10, %c0_11, %c0_12] : memref<9x8x4xf32, #tpu.memory_space<vmem>>, vector<1x8x4xf32>
    %10 = vector.shape_cast %9 : vector<1x8x4xf32> to vector<8x4xf32>
    %cst_13 = arith.constant dense<0.000000e+00> : vector<8x288xf32>
    %11 = tpu.matmul %10, %8, %cst_13 {dimension_numbers = #tpu.dot_dimension_numbers<[1], [0], [0], [1], [0, 0, 1, 1], [], []>} : vector<8x4xf32>, vector<4x288xf32>, vector<8x288xf32> -> vector<8x288xf32>
    %12 = arith.addf %6, %11 : vector<8x288xf32>
    %c0_14 = arith.constant 0 : index
    %c0_15 = arith.constant 0 : index
    %c0_16 = arith.constant 0 : index
    %c2 = arith.constant 2 : index
    %13 = vector.load %arg2[%c0_14, %c0_15, %c0_16, %c2] : memref<1x1x4x326xf32, #tpu.memory_space<vmem>>, vector<1x1x4x288xf32>
    %14 = vector.shape_cast %13 : vector<1x1x4x288xf32> to vector<4x288xf32>
    %c2_17 = arith.constant 2 : index
    %c0_18 = arith.constant 0 : index
    %c0_19 = arith.constant 0 : index
    %15 = vector.load %arg3[%c2_17, %c0_18, %c0_19] : memref<9x8x4xf32, #tpu.memory_space<vmem>>, vector<1x8x4xf32>
    %16 = vector.shape_cast %15 : vector<1x8x4xf32> to vector<8x4xf32>
    %cst_20 = arith.constant dense<0.000000e+00> : vector<8x288xf32>
    %17 = tpu.matmul %16, %14, %cst_20 {dimension_numbers = #tpu.dot_dimension_numbers<[1], [0], [0], [1], [0, 0, 1, 1], [], []>} : vector<8x4xf32>, vector<4x288xf32>, vector<8x288xf32> -> vector<8x288xf32>
    %18 = arith.addf %12, %17 : vector<8x288xf32>
    %c0_21 = arith.constant 0 : index
    %c0_22 = arith.constant 0 : index
    %c0_23 = arith.constant 0 : index
    %c18 = arith.constant 18 : index
    %19 = vector.load %arg2[%c0_21, %c0_22, %c0_23, %c18] : memref<1x1x4x326xf32, #tpu.memory_space<vmem>>, vector<1x1x4x288xf32>
    %20 = vector.shape_cast %19 : vector<1x1x4x288xf32> to vector<4x288xf32>
    %c3 = arith.constant 3 : index
    %c0_24 = arith.constant 0 : index
    %c0_25 = arith.constant 0 : index
    %21 = vector.load %arg3[%c3, %c0_24, %c0_25] : memref<9x8x4xf32, #tpu.memory_space<vmem>>, vector<1x8x4xf32>
    %22 = vector.shape_cast %21 : vector<1x8x4xf32> to vector<8x4xf32>
    %cst_26 = arith.constant dense<0.000000e+00> : vector<8x288xf32>
    %23 = tpu.matmul %22, %20, %cst_26 {dimension_numbers = #tpu.dot_dimension_numbers<[1], [0], [0], [1], [0, 0, 1, 1], [], []>} : vector<8x4xf32>, vector<4x288xf32>, vector<8x288xf32> -> vector<8x288xf32>
    %24 = arith.addf %18, %23 : vector<8x288xf32>
    %c0_27 = arith.constant 0 : index
    %c0_28 = arith.constant 0 : index
    %c0_29 = arith.constant 0 : index
    %c19 = arith.constant 19 : index
    %25 = vector.load %arg2[%c0_27, %c0_28, %c0_29, %c19] : memref<1x1x4x326xf32, #tpu.memory_space<vmem>>, vector<1x1x4x288xf32>
    %26 = vector.shape_cast %25 : vector<1x1x4x288xf32> to vector<4x288xf32>
    %c4 = arith.constant 4 : index
    %c0_30 = arith.constant 0 : index
    %c0_31 = arith.constant 0 : index
    %27 = vector.load %arg3[%c4, %c0_30, %c0_31] : memref<9x8x4xf32, #tpu.memory_space<vmem>>, vector<1x8x4xf32>
    %28 = vector.shape_cast %27 : vector<1x8x4xf32> to vector<8x4xf32>
    %cst_32 = arith.constant dense<0.000000e+00> : vector<8x288xf32>
    %29 = tpu.matmul %28, %26, %cst_32 {dimension_numbers = #tpu.dot_dimension_numbers<[1], [0], [0], [1], [0, 0, 1, 1], [], []>} : vector<8x4xf32>, vector<4x288xf32>, vector<8x288xf32> -> vector<8x288xf32>
    %30 = arith.addf %24, %29 : vector<8x288xf32>
    %c0_33 = arith.constant 0 : index
    %c0_34 = arith.constant 0 : index
    %c0_35 = arith.constant 0 : index
    %c20 = arith.constant 20 : index
    %31 = vector.load %arg2[%c0_33, %c0_34, %c0_35, %c20] : memref<1x1x4x326xf32, #tpu.memory_space<vmem>>, vector<1x1x4x288xf32>
    %32 = vector.shape_cast %31 : vector<1x1x4x288xf32> to vector<4x288xf32>
    %c5 = arith.constant 5 : index
    %c0_36 = arith.constant 0 : index
    %c0_37 = arith.constant 0 : index
    %33 = vector.load %arg3[%c5, %c0_36, %c0_37] : memref<9x8x4xf32, #tpu.memory_space<vmem>>, vector<1x8x4xf32>
    %34 = vector.shape_cast %33 : vector<1x8x4xf32> to vector<8x4xf32>
    %cst_38 = arith.constant dense<0.000000e+00> : vector<8x288xf32>
    %35 = tpu.matmul %34, %32, %cst_38 {dimension_numbers = #tpu.dot_dimension_numbers<[1], [0], [0], [1], [0, 0, 1, 1], [], []>} : vector<8x4xf32>, vector<4x288xf32>, vector<8x288xf32> -> vector<8x288xf32>
    %36 = arith.addf %30, %35 : vector<8x288xf32>
    %c0_39 = arith.constant 0 : index
    %c0_40 = arith.constant 0 : index
    %c0_41 = arith.constant 0 : index
    %c36 = arith.constant 36 : index
    %37 = vector.load %arg2[%c0_39, %c0_40, %c0_41, %c36] : memref<1x1x4x326xf32, #tpu.memory_space<vmem>>, vector<1x1x4x288xf32>
    %38 = vector.shape_cast %37 : vector<1x1x4x288xf32> to vector<4x288xf32>
    %c6 = arith.constant 6 : index
    %c0_42 = arith.constant 0 : index
    %c0_43 = arith.constant 0 : index
    %39 = vector.load %arg3[%c6, %c0_42, %c0_43] : memref<9x8x4xf32, #tpu.memory_space<vmem>>, vector<1x8x4xf32>
    %40 = vector.shape_cast %39 : vector<1x8x4xf32> to vector<8x4xf32>
    %cst_44 = arith.constant dense<0.000000e+00> : vector<8x288xf32>
    %41 = tpu.matmul %40, %38, %cst_44 {dimension_numbers = #tpu.dot_dimension_numbers<[1], [0], [0], [1], [0, 0, 1, 1], [], []>} : vector<8x4xf32>, vector<4x288xf32>, vector<8x288xf32> -> vector<8x288xf32>
    %42 = arith.addf %36, %41 : vector<8x288xf32>
    %c0_45 = arith.constant 0 : index
    %c0_46 = arith.constant 0 : index
    %c0_47 = arith.constant 0 : index
    %c37 = arith.constant 37 : index
    %43 = vector.load %arg2[%c0_45, %c0_46, %c0_47, %c37] : memref<1x1x4x326xf32, #tpu.memory_space<vmem>>, vector<1x1x4x288xf32>
    %44 = vector.shape_cast %43 : vector<1x1x4x288xf32> to vector<4x288xf32>
    %c7 = arith.constant 7 : index
    %c0_48 = arith.constant 0 : index
    %c0_49 = arith.constant 0 : index
    %45 = vector.load %arg3[%c7, %c0_48, %c0_49] : memref<9x8x4xf32, #tpu.memory_space<vmem>>, vector<1x8x4xf32>
    %46 = vector.shape_cast %45 : vector<1x8x4xf32> to vector<8x4xf32>
    %cst_50 = arith.constant dense<0.000000e+00> : vector<8x288xf32>
    %47 = tpu.matmul %46, %44, %cst_50 {dimension_numbers = #tpu.dot_dimension_numbers<[1], [0], [0], [1], [0, 0, 1, 1], [], []>} : vector<8x4xf32>, vector<4x288xf32>, vector<8x288xf32> -> vector<8x288xf32>
    %48 = arith.addf %42, %47 : vector<8x288xf32>
    %c0_51 = arith.constant 0 : index
    %c0_52 = arith.constant 0 : index
    %c0_53 = arith.constant 0 : index
    %c38 = arith.constant 38 : index
    %49 = vector.load %arg2[%c0_51, %c0_52, %c0_53, %c38] : memref<1x1x4x326xf32, #tpu.memory_space<vmem>>, vector<1x1x4x288xf32>
    %50 = vector.shape_cast %49 : vector<1x1x4x288xf32> to vector<4x288xf32>
    %c8 = arith.constant 8 : index
    %c0_54 = arith.constant 0 : index
    %c0_55 = arith.constant 0 : index
    %51 = vector.load %arg3[%c8, %c0_54, %c0_55] : memref<9x8x4xf32, #tpu.memory_space<vmem>>, vector<1x8x4xf32>
    %52 = vector.shape_cast %51 : vector<1x8x4xf32> to vector<8x4xf32>
    %cst_56 = arith.constant dense<0.000000e+00> : vector<8x288xf32>
    %53 = tpu.matmul %52, %50, %cst_56 {dimension_numbers = #tpu.dot_dimension_numbers<[1], [0], [0], [1], [0, 0, 1, 1], [], []>} : vector<8x4xf32>, vector<4x288xf32>, vector<8x288xf32> -> vector<8x288xf32>
    %54 = arith.addf %48, %53 : vector<8x288xf32>
    %c0_57 = arith.constant 0 : index
    %c0_58 = arith.constant 0 : index
    %c0_59 = arith.constant 0 : index
    %c0_60 = arith.constant 0 : index
    %55 = vector.load %arg4[%c0_57, %c0_58, %c0_59, %c0_60] : memref<1x1x8x288xf32, #tpu.memory_space<vmem>>, vector<1x1x8x288xf32>
    %56 = vector.shape_cast %55 : vector<1x1x8x288xf32> to vector<8x288xf32>
    %57 = vector.shape_cast %54 : vector<8x288xf32> to vector<1x1x8x288xf32>
    tpu.vector_store %arg4[%c0_57, %c0_58, %c0_59, %c0_60], %57 {strides = array<i32>} : memref<1x1x8x288xf32, #tpu.memory_space<vmem>>, vector<1x1x8x288xf32>,
    return
  }
  func.func @transform_0(%arg0: i32, %arg1: i32) -> (i32, i32, i32, i32) {
    %c0_i32 = arith.constant 0 : i32
    %c0_i32_0 = arith.constant 0 : i32
    %c0_i32_1 = arith.constant 0 : i32
    return %arg0, %arg1, %c0_i32, %c0_i32_0 : i32, i32, i32, i32
  }
  func.func @transform_1(%arg0: i32, %arg1: i32) -> (i32, i32, i32) {
    %c0_i32 = arith.constant 0 : i32
    %c0_i32_0 = arith.constant 0 : i32
    %c0_i32_1 = arith.constant 0 : i32
    %c0_i32_2 = arith.constant 0 : i32
    return %c0_i32, %c0_i32_0, %c0_i32_1 : i32, i32, i32
  }
  func.func @transform_2(%arg0: i32, %arg1: i32) -> (i32, i32, i32, i32) {
    %c0_i32 = arith.constant 0 : i32
    %c0_i32_0 = arith.constant 0 : i32
    %c0_i32_1 = arith.constant 0 : i32
    return %arg0, %arg1, %c0_i32, %c0_i32_0 : i32, i32, i32, i32
  }
}

</mosaic_0001>

<llo_original>
// kernel: tpu_custom_call.1
$region0: #{tpu_custom_call.1}
  #allocation0 [shape = 'u32[]', space=smem, size = 0x4, offset = 0x4, fixed_abs, tag = 'smem constant byte address 0x4 - core index']
  #allocation1 [shape = 'u32[144,128]{1,0:T(1,128)}', space=vmem, size = 0x12000, scoped, tag = 'internal scratch']
  %s0 = inlined_call_operand.vmem [shape: f32[2,1,4,326], index: 0, kind: input, shape index: {}]
  %s1 = inlined_call_operand.vmem [shape: f32[9,8,4], index: 1, kind: input, shape index: {}]
  %s2 = inlined_call_operand.hbm [shape: f32[2,1,8,288], index: 2, kind: output, shape index: {}]
  %s3 = sld [smem:[#allocation0]]
  $region41: #{tpu_custom_call.1} parent=0
    _
  %s5 = ssub.s32 1, %s3
  %s6 = scalar_select 0, %s5, %s3
  $region1: #{tpu_custom_call.1} parent=0
    #allocation2 [shape = 'u8[24576]{0}', space=vmem, size = 0x6000, scoped, tag = 'output window, operand 0']
    #allocation3 [shape = 's32[2]{0}', space=sflag, size = 0x8, scoped, tag = 'scoped memory for tpu_custom_call.1']
    %7 = vsyncpa [#allocation3], 0
    %s8 = scalar_lea.sflag [#allocation3], 1
    %9 = vsyncpa %s8, 0
    loop: start=0, step=1, limit=4
    $region2: #{tpu_custom_call.1} parent=1 // loop_pre_header
      _
    $region3: #{tpu_custom_call.1} parent=1 // loop_header
      %s11 = sphi 0, %s15
      %p12 = scmp.ge.s32.totalorder %s11, 4
      %s18 = sphi 0, %s30
      %s19 = sphi 0, %s26
      %s20 = sphi 0, %s18
      %s21 = sphi 0, %s19
      %s22 = sphi 0, %s20
      %s23 = sphi 0, %s21
      %s35 = sphi 0, %s37
      %s38 = sphi 0, %s35
      %s39 = sphi 0, %s38
      %s55 = sphi 0, %s39
      %s59 = sphi 0, %s59
      %s61 = sphi 0, %s59
      %s62 = sphi 0, %s61
      %s76 = sphi 0, %s62
      %s84 = sphi 0, %s86
      %s87 = sphi 0, %s84
      %s88 = sphi 0, %s87
      %s104 = sphi 0, %s88
    $region4: #{tpu_custom_call.1} parent=1 // loop_header_branch
      %14 = sbr.rel (%p12) target = $region8
    $region5: #{tpu_custom_call.1} parent=1 // loop_body
      %s16 = ssub.s32 %s11, 1
      %s17 = ssub.s32 %s11, 2
      %s24 = sadd.s32 1, %s19
      %p25 = scmp.ge.s32.totalorder %s24, 1
      %s26 = scalar_select %p25, 0, %s24
      %s27 = sadd.s32 1, %s18
      %s28 = scalar_select %p25, %s27, %s18
      %p29 = scmp.ge.s32.totalorder %s28, 2
      %s30 = scalar_select %p29, 0, %s28
      %s31 = ssub.s32 %s18, %s30
      %s32 = ssub.s32 %s19, %s26
      %s33 = sor.u32 %s31, %s32
      %p34 = scmp.eq.s32.totalorder %s33, 0
      %s36 = sadd.s32 %s35, 1
      %s37 = scalar_select %p34, %s35, %s36
      %p40 = pneg %p34
      %p41 = scmp.eq.s32.totalorder %s11, 1
      %p42 = por %p40, %p41
      %p43 = scmp.ne.s32.totalorder %s35, %s38
      %p44 = scmp.eq.s32.totalorder %s11, 0
      %p45 = por %p43, %p44
      %p46 = scmp.ne.s32.totalorder %s35, %s38
      %p47 = scmp.eq.s32.totalorder %s16, 1
      %p48 = por %p46, %p47
      %p49 = scmp.ne.s32.totalorder %s38, %s39
      %p50 = scmp.eq.s32.totalorder %s16, 0
      %p51 = por %p49, %p50
      %p52 = scmp.ne.s32.totalorder %s38, %s39
      %p53 = scmp.eq.s32.totalorder %s17, 1
      %p54 = por %p52, %p53
      %p56 = scmp.ne.s32.totalorder %s39, %s55
      %p57 = scmp.eq.s32.totalorder %s17, 0
      %p58 = por %p56, %p57
      %s60 = sadd.s32 %s59, 1
      %p63 = scmp.eq.s32.totalorder %s11, 1
      %p64 = scmp.ne.s32.totalorder %s59, %s61
      %p65 = scmp.eq.s32.totalorder %s11, 0
      %p66 = por %p64, %p65
      %p67 = scmp.ne.s32.totalorder %s59, %s61
      %p68 = scmp.eq.s32.totalorder %s16, 1
      %p69 = por %p67, %p68
      %p70 = scmp.ne.s32.totalorder %s61, %s62
      %p71 = scmp.eq.s32.totalorder %s16, 0
      %p72 = por %p70, %p71
      %p73 = scmp.ne.s32.totalorder %s61, %s62
      %p74 = scmp.eq.s32.totalorder %s17, 1
      %p75 = por %p73, %p74
      %p77 = scmp.ne.s32.totalorder %s62, %s76
      %p78 = scmp.eq.s32.totalorder %s17, 0
      %p79 = por %p77, %p78
      %s80 = ssub.s32 %s18, %s30
      %s81 = ssub.s32 %s19, %s26
      %s82 = sor.u32 %s80, %s81
      %p83 = scmp.eq.s32.totalorder %s82, 0
      %s85 = sadd.s32 %s84, 1
      %s86 = scalar_select %p83, %s84, %s85
      %p89 = pneg %p83
      %p90 = scmp.eq.s32.totalorder %s11, 1
      %p91 = por %p89, %p90
      %p92 = scmp.ne.s32.totalorder %s84, %s87
      %p93 = scmp.eq.s32.totalorder %s11, 0
      %p94 = por %p92, %p93
      %p95 = scmp.ne.s32.totalorder %s84, %s87
      %p96 = scmp.eq.s32.totalorder %s16, 1
      %p97 = por %p95, %p96
      %p98 = scmp.ne.s32.totalorder %s87, %s88
      %p99 = scmp.eq.s32.totalorder %s16, 0
      %p100 = por %p98, %p99
      %p101 = scmp.ne.s32.totalorder %s87, %s88
      %p102 = scmp.eq.s32.totalorder %s17, 1
      %p103 = por %p101, %p102
      %p105 = scmp.ne.s32.totalorder %s88, %s104
      %p106 = scmp.eq.s32.totalorder %s17, 0
      %p107 = por %p105, %p106
      %p108 = scmp.le.s32.totalorder 1, %s11
      %p109 = scmp.lt.s32.totalorder %s11, 3
      %p110 = pnand %p108, %p109
      %p111 = pneg %p110
      // Predicated region
      $region9: #{tpu_custom_call.1} parent=5 // pred_check
        _
      $region10: #{tpu_custom_call.1} parent=5 // pred_check_branch
        %113 = sbr.rel (%p110) target = $region12
      $region11: #{tpu_custom_call.1} parent=5 // pred_region
        %s114 = ssub.s32 %s11, 1
        // Predicated region
        $region13: #{tpu_custom_call.1} parent=11 // pred_check
          %p115 = pneg %p72
        $region14: #{tpu_custom_call.1} parent=11 // pred_check_branch
          %117 = sbr.rel (%p115) target = $region16
        $region15: #{tpu_custom_call.1} parent=11 // pred_region
          _
        $region16: #{tpu_custom_call.1} parent=11 // pred_fallthru
          _
      $region12: #{tpu_custom_call.1} parent=5 // pred_fallthru
        _
      %p118 = scmp.lt.s32.totalorder %s11, 2
      // Predicated region
      $region17: #{tpu_custom_call.1} parent=5 // pred_check
        %p119 = pneg %p118
      $region18: #{tpu_custom_call.1} parent=5 // pred_check_branch
        %121 = sbr.rel (%p119) target = $region20
      $region19: #{tpu_custom_call.1} parent=5 // pred_region
        // Predicated region
        $region21: #{tpu_custom_call.1} parent=19 // pred_check
          %p122 = pneg %p45
        $region22: #{tpu_custom_call.1} parent=19 // pred_check_branch
          %124 = sbr.rel (%p122) target = $region24
        $region23: #{tpu_custom_call.1} parent=19 // pred_region
          %p125 = scmp.lt.s32.totalorder %s18, 1
          %s126 = scalar_select %p125, %s18, 1
          %p127 = scmp.lt.s32.totalorder %s19, 0
          %s128 = scalar_select %p127, %s19, 0
          %s129 = smul.addr %s128, 3
          %s130 = smul.addr %s126, 3
          %s131 = sadd.s32 %s129, %s130
          %s132 = smul.addr %s131, 4
          %s133 = scalar_lea.vmem %s0, %s132
        $region24: #{tpu_custom_call.1} parent=19 // pred_fallthru
          _
      $region20: #{tpu_custom_call.1} parent=5 // pred_fallthru
        _
      %p134 = scmp.le.s32.totalorder 1, %s11
      %p135 = scmp.lt.s32.totalorder %s11, 3
      %p136 = pnand %p134, %p135
      %p137 = pneg %p136
      // Predicated region
      $region25: #{tpu_custom_call.1} parent=5 // pred_check
        _
      $region26: #{tpu_custom_call.1} parent=5 // pred_check_branch
        %139 = sbr.rel (%p136) target = $region28
      $region27: #{tpu_custom_call.1} parent=5 // pred_region
        %s140 = ssub.s32 %s11, 1
        %p141 = scmp.lt.s32.totalorder %s20, 1
        %s142 = scalar_select %p141, %s20, 1
        %p143 = scmp.lt.s32.totalorder %s21, 0
        %s144 = scalar_select %p143, %s21, 0
        %s145 = smul.addr %s144, 3
        %s146 = smul.addr %s142, 3
        %s147 = sadd.s32 %s145, %s146
        %s148 = smul.addr %s147, 4
        %s149 = scalar_lea.vmem %s0, %s148
        %p150 = pneg %p51
        %p151 = pneg %p48
        %p152 = pneg %p72
        %p153 = pneg %p69
        %p154 = pneg %p100
        %p155 = pneg %p97
        %s156 = sand.u32 %s87, 1
        %s157 = scalar_lea.sflag [#allocation3], %s156
        %s158 = sand.u32 %s87, 1
        %s159 = smul.addr %s158, 24
        %s160 = scalar_lea.vmem [#allocation2], %s159
        %p161 = scmp.lt.s32.totalorder %s20, 1
        %s162 = scalar_select %p161, %s20, 1
        %p163 = scmp.lt.s32.totalorder %s21, 0
        %s164 = scalar_select %p163, %s21, 0
        %s165 = smul.addr %s164, 3
        %s166 = smul.addr %s162, 3
        %s167 = sadd.s32 %s165, %s166
        %s168 = smul.addr %s167, 4
        %s169 = scalar_lea.vmem %s0, %s168
        %v170 = vld [vmem:[%s169] sm:$0xff]
        %v171 = vld [vmem:[%s169 + $0x8] sm:$0xf]
        %v172 = vld [vmem:[%s1] sm:$0xff]
        %s173 = scalar_lea.vmem %s1, 8
        %v174 = vld [vmem:[%s173] sm:$0xff]
        %v177 = vcombine.high %v170, %v170
        %178 = vrot.lane.b32.xlu0 %v170, 127
        %v179 = vpop.permute.xlu0 %178
        %180 = vrot.lane.b32.xlu0 %v177, 127
        %v181 = vpop.permute.xlu0 %180
        %182 = vrot.lane.b32.xlu0 %v171, 127
        %v183 = vpop.permute.xlu0 %182
        %vm184 = vcmask 1039360
        %v185 = vsel %vm184, %v179, %v181
        %v186 = vsel %vm184, %v181, %v183
        %vm187 = vcmask 31744
        %v189 = vsel %vm187, %v174, 0
        %vm191 = vcmask 1043456
        %v192 = vsel %vm191, %v185, 0
        %v194 = vsel %vm191, %v186, 0
        %v196 = vsel %vm191, %v183, 0
        %198 = vmatprep.subr.mxu0 %v194
        %199 = vmatpush1.msra.mxu0 %v192
        %200 = vmatprep.subr.mxu0 0.0
        %201 = vmatpush1.msra.mxu0 0.0
        %202 = vmatprep.subr.mxu0 0.0
        %203 = vmatpush1.msra.mxu0 0.0
        %204 = vmatprep.subr.mxu0 0.0
        %205 = vmatpush1.msra.mxu0 0.0
        %206 = vmatprep.subr.mxu0 0.0
        %207 = vmatpush1.msra.mxu0 0.0
        %208 = vmatprep.subr.mxu0 0.0
        %209 = vmatpush1.msra.mxu0 0.0
        %210 = vmatprep.subr.mxu0 0.0
        %211 = vmatpush1.msra.mxu0 0.0
        %212 = vmatprep.subr.mxu0 0.0
        %213 = vmatpush1.msra.mxu0 0.0
        %214 = vmatprep.subr.mxu0 0.0
        %215 = vmatpush1.msra.mxu0 0.0
        %216 = vmatprep.subr.mxu0 0.0
        %217 = vmatpush1.msra.mxu0 0.0
        %218 = vmatprep.subr.mxu0 0.0
        %219 = vmatpush1.msra.mxu0 0.0
        %220 = vmatprep.subr.mxu0 0.0
        %221 = vmatpush1.msra.mxu0 0.0
        %222 = vmatprep.subr.mxu0 0.0
        %223 = vmatpush1.msra.mxu0 0.0
        %224 = vmatprep.subr.mxu0 0.0
        %225 = vmatpush1.msra.mxu0 0.0
        %226 = vmatprep.subr.mxu0 0.0
        %227 = vmatpush1.msra.mxu0 0.0
        %228 = vmatprep.subr.mxu0 0.0
        %229 = vmatpush1.msra.mxu0 0.0
        %230 = vmatprep.subr.mxu0 0.0
        %231 = vmatpush1.msra.mxu0 0.0
        %232 = vmatprep.subr.mxu0 0.0
        %233 = vmatpush1.msra.mxu0 0.0
        %234 = vmatprep.subr.mxu0 0.0
        %235 = vmatpush1.msra.mxu0 0.0
        %236 = vmatprep.subr.mxu0 0.0
        %237 = vmatpush1.msra.mxu0 0.0
        %238 = vmatprep.subr.mxu0 0.0
        %239 = vmatpush1.msra.mxu0 0.0
        %240 = vmatprep.subr.mxu0 0.0
        %241 = vmatpush1.msra.mxu0 0.0
        %242 = vmatprep.subr.mxu0 0.0
        %243 = vmatpush1.msra.mxu0 0.0
        %244 = vmatprep.subr.mxu0 0.0
        %245 = vmatpush1.msra.mxu0 0.0
        %246 = vmatprep.subr.mxu0 0.0
        %247 = vmatpush1.msra.mxu0 0.0
        %248 = vmatprep.subr.mxu0 0.0
        %249 = vmatpush1.msra.mxu0 0.0
        %250 = vmatprep.subr.mxu0 0.0
        %251 = vmatpush1.msra.mxu0 0.0
        %252 = vmatprep.subr.mxu0 0.0
        %253 = vmatpush1.msra.mxu0 0.0
        %254 = vmatprep.subr.mxu0 0.0
        %255 = vmatpush1.msra.mxu0 0.0
        %256 = vmatprep.subr.mxu0 0.0
        %257 = vmatpush1.msra.mxu0 0.0
        %258 = vmatprep.subr.mxu0 0.0
        %259 = vmatpush1.msra.mxu0 0.0
        %260 = vmatprep.subr.mxu0 0.0
        %261 = vmatpush1.msra.mxu0 0.0
        %262 = vmatprep.mubr.f32.mxu0 0.0
        %263 = vmatmul.mubr.f32.gmra.mrb[0].mxu0 %v189
        %v264 = vpop.f32.mrb[0].mxu0
        %v265 = vadd.f32 0.0, %v264
        %v266 = vpop.f32.mrb[0].mxu0
        %v267 = vadd.f32 0.0, %v266
        %268 = vdwg.mxu0
        %269 = vmatprep.subr.mxu0 0.0
        %270 = vmatpush1.msra.mxu0 %v196
        %271 = vmatprep.subr.mxu0 0.0
        %272 = vmatpush1.msra.mxu0 0.0
        %273 = vmatprep.subr.mxu0 0.0
        %274 = vmatpush1.msra.mxu0 0.0
        %275 = vmatprep.subr.mxu0 0.0
        %276 = vmatpush1.msra.mxu0 0.0
        %277 = vmatprep.subr.mxu0 0.0
        %278 = vmatpush1.msra.mxu0 0.0
        %279 = vmatprep.subr.mxu0 0.0
        %280 = vmatpush1.msra.mxu0 0.0
        %281 = vmatprep.subr.mxu0 0.0
        %282 = vmatpush1.msra.mxu0 0.0
        %283 = vmatprep.subr.mxu0 0.0
        %284 = vmatpush1.msra.mxu0 0.0
        %285 = vmatprep.subr.mxu0 0.0
        %286 = vmatpush1.msra.mxu0 0.0
        %287 = vmatprep.subr.mxu0 0.0
        %288 = vmatpush1.msra.mxu0 0.0
        %289 = vmatprep.subr.mxu0 0.0
        %290 = vmatpush1.msra.mxu0 0.0
        %291 = vmatprep.subr.mxu0 0.0
        %292 = vmatpush1.msra.mxu0 0.0
        %293 = vmatprep.subr.mxu0 0.0
        %294 = vmatpush1.msra.mxu0 0.0
        %295 = vmatprep.subr.mxu0 0.0
        %296 = vmatpush1.msra.mxu0 0.0
        %297 = vmatprep.subr.mxu0 0.0
        %298 = vmatpush1.msra.mxu0 0.0
        %299 = vmatprep.subr.mxu0 0.0
        %300 = vmatpush1.msra.mxu0 0.0
        %301 = vmatprep.subr.mxu0 0.0
        %302 = vmatpush1.msra.mxu0 0.0
        %303 = vmatprep.subr.mxu0 0.0
        %304 = vmatpush1.msra.mxu0 0.0
        %305 = vmatprep.subr.mxu0 0.0
        %306 = vmatpush1.msra.mxu0 0.0
        %307 = vmatprep.subr.mxu0 0.0
        %308 = vmatpush1.msra.mxu0 0.0
        %309 = vmatprep.subr.mxu0 0.0
        %310 = vmatpush1.msra.mxu0 0.0
        %311 = vmatprep.subr.mxu0 0.0
        %312 = vmatpush1.msra.mxu0 0.0
        %313 = vmatprep.subr.mxu0 0.0
        %314 = vmatpush1.msra.mxu0 0.0
        %315 = vmatprep.subr.mxu0 0.0
        %316 = vmatpush1.msra.mxu0 0.0
        %317 = vmatprep.subr.mxu0 0.0
        %318 = vmatpush1.msra.mxu0 0.0
        %319 = vmatprep.subr.mxu0 0.0
        %320 = vmatpush1.msra.mxu0 0.0
        %321 = vmatprep.subr.mxu0 0.0
        %322 = vmatpush1.msra.mxu0 0.0
        %323 = vmatprep.subr.mxu0 0.0
        %324 = vmatpush1.msra.mxu0 0.0
        %325 = vmatprep.subr.mxu0 0.0
        %326 = vmatpush1.msra.mxu0 0.0
        %327 = vmatprep.subr.mxu0 0.0
        %328 = vmatpush1.msra.mxu0 0.0
        %329 = vmatprep.subr.mxu0 0.0
        %330 = vmatpush1.msra.mxu0 0.0
        %331 = vmatprep.subr.mxu0 0.0
        %332 = vmatpush1.msra.mxu0 0.0
        %333 = vmatprep.mubr.f32.mxu0 0.0
        %334 = vmatmul.mubr.f32.gmra.mrb[0].mxu0 %v189
        %v335 = vpop.f32.mrb[0].mxu0
        %v336 = vadd.f32 0.0, %v335
        %v337 = vpop.f32.mrb[0].mxu0
        %338 = vdwg.mxu0
        %v340 = vsel %vm187, %v172, 0
        %v342 = vsel %vm191, %v170, 0
        %v344 = vsel %vm191, %v177, 0
        %v346 = vsel %vm191, %v171, 0
        %348 = vmatprep.subr.mxu0 %v344
        %349 = vmatpush1.msra.mxu0 %v342
        %350 = vmatprep.subr.mxu0 0.0
        %351 = vmatpush1.msra.mxu0 0.0
        %352 = vmatprep.subr.mxu0 0.0
        %353 = vmatpush1.msra.mxu0 0.0
        %354 = vmatprep.subr.mxu0 0.0
        %355 = vmatpush1.msra.mxu0 0.0
        %356 = vmatprep.subr.mxu0 0.0
        %357 = vmatpush1.msra.mxu0 0.0
        %358 = vmatprep.subr.mxu0 0.0
        %359 = vmatpush1.msra.mxu0 0.0
        %360 = vmatprep.subr.mxu0 0.0
        %361 = vmatpush1.msra.mxu0 0.0
        %362 = vmatprep.subr.mxu0 0.0
        %363 = vmatpush1.msra.mxu0 0.0
        %364 = vmatprep.subr.mxu0 0.0
        %365 = vmatpush1.msra.mxu0 0.0
        %366 = vmatprep.subr.mxu0 0.0
        %367 = vmatpush1.msra.mxu0 0.0
        %368 = vmatprep.subr.mxu0 0.0
        %369 = vmatpush1.msra.mxu0 0.0
        %370 = vmatprep.subr.mxu0 0.0
        %371 = vmatpush1.msra.mxu0 0.0
        %372 = vmatprep.subr.mxu0 0.0
        %373 = vmatpush1.msra.mxu0 0.0
        %374 = vmatprep.subr.mxu0 0.0
        %375 = vmatpush1.msra.mxu0 0.0
        %376 = vmatprep.subr.mxu0 0.0
        %377 = vmatpush1.msra.mxu0 0.0
        %378 = vmatprep.subr.mxu0 0.0
        %379 = vmatpush1.msra.mxu0 0.0
        %380 = vmatprep.subr.mxu0 0.0
        %381 = vmatpush1.msra.mxu0 0.0
        %382 = vmatprep.subr.mxu0 0.0
        %383 = vmatpush1.msra.mxu0 0.0
        %384 = vmatprep.subr.mxu0 0.0
        %385 = vmatpush1.msra.mxu0 0.0
        %386 = vmatprep.subr.mxu0 0.0
        %387 = vmatpush1.msra.mxu0 0.0
        %388 = vmatprep.subr.mxu0 0.0
        %389 = vmatpush1.msra.mxu0 0.0
        %390 = vmatprep.subr.mxu0 0.0
        %391 = vmatpush1.msra.mxu0 0.0
        %392 = vmatprep.subr.mxu0 0.0
        %393 = vmatpush1.msra.mxu0 0.0
        %394 = vmatprep.subr.mxu0 0.0
        %395 = vmatpush1.msra.mxu0 0.0
        %396 = vmatprep.subr.mxu0 0.0
        %397 = vmatpush1.msra.mxu0 0.0
        %398 = vmatprep.subr.mxu0 0.0
        %399 = vmatpush1.msra.mxu0 0.0
        %400 = vmatprep.subr.mxu0 0.0
        %401 = vmatpush1.msra.mxu0 0.0
        %402 = vmatprep.subr.mxu0 0.0
        %403 = vmatpush1.msra.mxu0 0.0
        %404 = vmatprep.subr.mxu0 0.0
        %405 = vmatpush1.msra.mxu0 0.0
        %406 = vmatprep.subr.mxu0 0.0
        %407 = vmatpush1.msra.mxu0 0.0
        %408 = vmatprep.subr.mxu0 0.0
        %409 = vmatpush1.msra.mxu0 0.0
        %410 = vmatprep.subr.mxu0 0.0
        %411 = vmatpush1.msra.mxu0 0.0
        %412 = vmatprep.mubr.f32.mxu0 0.0
        %413 = vmatmul.mubr.f32.gmra.mrb[0].mxu0 %v340
        %v414 = vpop.f32.mrb[0].mxu0
        %v415 = vadd.f32 %v265, %v414
        %v416 = vpop.f32.mrb[0].mxu0
        %v417 = vadd.f32 %v267, %v416
        %418 = vdwg.mxu0
        %419 = vmatprep.subr.mxu0 0.0
        %420 = vmatpush1.msra.mxu0 %v346
        %421 = vmatprep.subr.mxu0 0.0
        %422 = vmatpush1.msra.mxu0 0.0
        %423 = vmatprep.subr.mxu0 0.0
        %424 = vmatpush1.msra.mxu0 0.0
        %425 = vmatprep.subr.mxu0 0.0
        %426 = vmatpush1.msra.mxu0 0.0
        %427 = vmatprep.subr.mxu0 0.0
        %428 = vmatpush1.msra.mxu0 0.0
        %429 = vmatprep.subr.mxu0 0.0
        %430 = vmatpush1.msra.mxu0 0.0
        %431 = vmatprep.subr.mxu0 0.0
        %432 = vmatpush1.msra.mxu0 0.0
        %433 = vmatprep.subr.mxu0 0.0
        %434 = vmatpush1.msra.mxu0 0.0
        %435 = vmatprep.subr.mxu0 0.0
        %436 = vmatpush1.msra.mxu0 0.0
        %437 = vmatprep.subr.mxu0 0.0
        %438 = vmatpush1.msra.mxu0 0.0
        %439 = vmatprep.subr.mxu0 0.0
        %440 = vmatpush1.msra.mxu0 0.0
        %441 = vmatprep.subr.mxu0 0.0
        %442 = vmatpush1.msra.mxu0 0.0
        %443 = vmatprep.subr.mxu0 0.0
        %444 = vmatpush1.msra.mxu0 0.0
        %445 = vmatprep.subr.mxu0 0.0
        %446 = vmatpush1.msra.mxu0 0.0
        %447 = vmatprep.subr.mxu0 0.0
        %448 = vmatpush1.msra.mxu0 0.0
        %449 = vmatprep.subr.mxu0 0.0
        %450 = vmatpush1.msra.mxu0 0.0
        %451 = vmatprep.subr.mxu0 0.0
        %452 = vmatpush1.msra.mxu0 0.0
        %453 = vmatprep.subr.mxu0 0.0
        %454 = vmatpush1.msra.mxu0 0.0
        %455 = vmatprep.subr.mxu0 0.0
        %456 = vmatpush1.msra.mxu0 0.0
        %457 = vmatprep.subr.mxu0 0.0
        %458 = vmatpush1.msra.mxu0 0.0
        %459 = vmatprep.subr.mxu0 0.0
        %460 = vmatpush1.msra.mxu0 0.0
        %461 = vmatprep.subr.mxu0 0.0
        %462 = vmatpush1.msra.mxu0 0.0
        %463 = vmatprep.subr.mxu0 0.0
        %464 = vmatpush1.msra.mxu0 0.0
        %465 = vmatprep.subr.mxu0 0.0
        %466 = vmatpush1.msra.mxu0 0.0
        %467 = vmatprep.subr.mxu0 0.0
        %468 = vmatpush1.msra.mxu0 0.0
        %469 = vmatprep.subr.mxu0 0.0
        %470 = vmatpush1.msra.mxu0 0.0
        %471 = vmatprep.subr.mxu0 0.0
        %472 = vmatpush1.msra.mxu0 0.0
        %473 = vmatprep.subr.mxu0 0.0
        %474 = vmatpush1.msra.mxu0 0.0
        %475 = vmatprep.subr.mxu0 0.0
        %476 = vmatpush1.msra.mxu0 0.0
        %477 = vmatprep.subr.mxu0 0.0
        %478 = vmatpush1.msra.mxu0 0.0
        %479 = vmatprep.subr.mxu0 0.0
        %480 = vmatpush1.msra.mxu0 0.0
        %481 = vmatprep.subr.mxu0 0.0
        %482 = vmatpush1.msra.mxu0 0.0
        %483 = vmatprep.mubr.f32.mxu0 0.0
        %484 = vmatmul.mubr.f32.gmra.mrb[0].mxu0 %v340
        %v485 = vpop.f32.mrb[0].mxu0
        %v486 = vadd.f32 %v336, %v485
        %v487 = vpop.f32.mrb[0].mxu0
        %488 = vdwg.mxu0
        %v489 = vld [vmem:[%s169] sm:$0xff]
        %v490 = vld [vmem:[%s169 + $0x8] sm:$0xf]
        %s491 = scalar_lea.vmem %s1, 16
        %v492 = vld [vmem:[%s491] sm:$0xff]
        %v495 = vcombine.high %v489, %v489
        %496 = vrot.lane.b32.xlu0 %v489, 126
        %v497 = vpop.permute.xlu0 %496
        %498 = vrot.lane.b32.xlu0 %v495, 126
        %v499 = vpop.permute.xlu0 %498
        %500 = vrot.lane.b32.xlu0 %v490, 126
        %v501 = vpop.permute.xlu0 %500
        %vm502 = vcmask 1031168
        %v503 = vsel %vm502, %v497, %v499
        %v504 = vsel %vm502, %v499, %v501
        %v506 = vsel %vm187, %v492, 0
        %v508 = vsel %vm191, %v503, 0
        %v510 = vsel %vm191, %v504, 0
        %v512 = vsel %vm191, %v501, 0
        %514 = vmatprep.subr.mxu0 %v510
        %515 = vmatpush1.msra.mxu0 %v508
        %516 = vmatprep.subr.mxu0 0.0
        %517 = vmatpush1.msra.mxu0 0.0
        %518 = vmatprep.subr.mxu0 0.0
        %519 = vmatpush1.msra.mxu0 0.0
        %520 = vmatprep.subr.mxu0 0.0
        %521 = vmatpush1.msra.mxu0 0.0
        %522 = vmatprep.subr.mxu0 0.0
        %523 = vmatpush1.msra.mxu0 0.0
        %524 = vmatprep.subr.mxu0 0.0
        %525 = vmatpush1.msra.mxu0 0.0
        %526 = vmatprep.subr.mxu0 0.0
        %527 = vmatpush1.msra.mxu0 0.0
        %528 = vmatprep.subr.mxu0 0.0
        %529 = vmatpush1.msra.mxu0 0.0
        %530 = vmatprep.subr.mxu0 0.0
        %531 = vmatpush1.msra.mxu0 0.0
        %532 = vmatprep.subr.mxu0 0.0
        %533 = vmatpush1.msra.mxu0 0.0
        %534 = vmatprep.subr.mxu0 0.0
        %535 = vmatpush1.msra.mxu0 0.0
        %536 = vmatprep.subr.mxu0 0.0
        %537 = vmatpush1.msra.mxu0 0.0
        %538 = vmatprep.subr.mxu0 0.0
        %539 = vmatpush1.msra.mxu0 0.0
        %540 = vmatprep.subr.mxu0 0.0
        %541 = vmatpush1.msra.mxu0 0.0
        %542 = vmatprep.subr.mxu0 0.0
        %543 = vmatpush1.msra.mxu0 0.0
        %544 = vmatprep.subr.mxu0 0.0
        %545 = vmatpush1.msra.mxu0 0.0
        %546 = vmatprep.subr.mxu0 0.0
        %547 = vmatpush1.msra.mxu0 0.0
        %548 = vmatprep.subr.mxu0 0.0
        %549 = vmatpush1.msra.mxu0 0.0
        %550 = vmatprep.subr.mxu0 0.0
        %551 = vmatpush1.msra.mxu0 0.0
        %552 = vmatprep.subr.mxu0 0.0
        %553 = vmatpush1.msra.mxu0 0.0
        %554 = vmatprep.subr.mxu0 0.0
        %555 = vmatpush1.msra.mxu0 0.0
        %556 = vmatprep.subr.mxu0 0.0
        %557 = vmatpush1.msra.mxu0 0.0
        %558 = vmatprep.subr.mxu0 0.0
        %559 = vmatpush1.msra.mxu0 0.0
        %560 = vmatprep.subr.mxu0 0.0
        %561 = vmatpush1.msra.mxu0 0.0
        %562 = vmatprep.subr.mxu0 0.0
        %563 = vmatpush1.msra.mxu0 0.0
        %564 = vmatprep.subr.mxu0 0.0
        %565 = vmatpush1.msra.mxu0 0.0
        %566 = vmatprep.subr.mxu0 0.0
        %567 = vmatpush1.msra.mxu0 0.0
        %568 = vmatprep.subr.mxu0 0.0
        %569 = vmatpush1.msra.mxu0 0.0
        %570 = vmatprep.subr.mxu0 0.0
        %571 = vmatpush1.msra.mxu0 0.0
        %572 = vmatprep.subr.mxu0 0.0
        %573 = vmatpush1.msra.mxu0 0.0
        %574 = vmatprep.subr.mxu0 0.0
        %575 = vmatpush1.msra.mxu0 0.0
        %576 = vmatprep.subr.mxu0 0.0
        %577 = vmatpush1.msra.mxu0 0.0
        %578 = vmatprep.mubr.f32.mxu0 0.0
        %579 = vmatmul.mubr.f32.gmra.mrb[0].mxu0 %v506
        %v580 = vpop.f32.mrb[0].mxu0
        %v581 = vadd.f32 0.0, %v580
        %v582 = vpop.f32.mrb[0].mxu0
        %v583 = vadd.f32 0.0, %v582
        %584 = vdwg.mxu0
        %585 = vmatprep.subr.mxu0 0.0
        %586 = vmatpush1.msra.mxu0 %v512
        %587 = vmatprep.subr.mxu0 0.0
        %588 = vmatpush1.msra.mxu0 0.0
        %589 = vmatprep.subr.mxu0 0.0
        %590 = vmatpush1.msra.mxu0 0.0
        %591 = vmatprep.subr.mxu0 0.0
        %592 = vmatpush1.msra.mxu0 0.0
        %593 = vmatprep.subr.mxu0 0.0
        %594 = vmatpush1.msra.mxu0 0.0
        %595 = vmatprep.subr.mxu0 0.0
        %596 = vmatpush1.msra.mxu0 0.0
        %597 = vmatprep.subr.mxu0 0.0
        %598 = vmatpush1.msra.mxu0 0.0
        %599 = vmatprep.subr.mxu0 0.0
        %600 = vmatpush1.msra.mxu0 0.0
        %601 = vmatprep.subr.mxu0 0.0
        %602 = vmatpush1.msra.mxu0 0.0
        %603 = vmatprep.subr.mxu0 0.0
        %604 = vmatpush1.msra.mxu0 0.0
        %605 = vmatprep.subr.mxu0 0.0
        %606 = vmatpush1.msra.mxu0 0.0
        %607 = vmatprep.subr.mxu0 0.0
        %608 = vmatpush1.msra.mxu0 0.0
        %609 = vmatprep.subr.mxu0 0.0
        %610 = vmatpush1.msra.mxu0 0.0
        %611 = vmatprep.subr.mxu0 0.0
        %612 = vmatpush1.msra.mxu0 0.0
        %613 = vmatprep.subr.mxu0 0.0
        %614 = vmatpush1.msra.mxu0 0.0
        %615 = vmatprep.subr.mxu0 0.0
        %616 = vmatpush1.msra.mxu0 0.0
        %617 = vmatprep.subr.mxu0 0.0
        %618 = vmatpush1.msra.mxu0 0.0
        %619 = vmatprep.subr.mxu0 0.0
        %620 = vmatpush1.msra.mxu0 0.0
        %621 = vmatprep.subr.mxu0 0.0
        %622 = vmatpush1.msra.mxu0 0.0
        %623 = vmatprep.subr.mxu0 0.0
        %624 = vmatpush1.msra.mxu0 0.0
        %625 = vmatprep.subr.mxu0 0.0
        %626 = vmatpush1.msra.mxu0 0.0
        %627 = vmatprep.subr.mxu0 0.0
        %628 = vmatpush1.msra.mxu0 0.0
        %629 = vmatprep.subr.mxu0 0.0
        %630 = vmatpush1.msra.mxu0 0.0
        %631 = vmatprep.subr.mxu0 0.0
        %632 = vmatpush1.msra.mxu0 0.0
        %633 = vmatprep.subr.mxu0 0.0
        %634 = vmatpush1.msra.mxu0 0.0
        %635 = vmatprep.subr.mxu0 0.0
        %636 = vmatpush1.msra.mxu0 0.0
        %637 = vmatprep.subr.mxu0 0.0
        %638 = vmatpush1.msra.mxu0 0.0
        %639 = vmatprep.subr.mxu0 0.0
        %640 = vmatpush1.msra.mxu0 0.0
        %641 = vmatprep.subr.mxu0 0.0
        %642 = vmatpush1.msra.mxu0 0.0
        %643 = vmatprep.subr.mxu0 0.0
        %644 = vmatpush1.msra.mxu0 0.0
        %645 = vmatprep.subr.mxu0 0.0
        %646 = vmatpush1.msra.mxu0 0.0
        %647 = vmatprep.subr.mxu0 0.0
        %648 = vmatpush1.msra.mxu0 0.0
        %649 = vmatprep.mubr.f32.mxu0 0.0
        %650 = vmatmul.mubr.f32.gmra.mrb[0].mxu0 %v506
        %v651 = vpop.f32.mrb[0].mxu0
        %v652 = vadd.f32 0.0, %v651
        %v653 = vpop.f32.mrb[0].mxu0
        %654 = vdwg.mxu0
        %v655 = vadd.f32 %v415, %v581
        %v656 = vadd.f32 %v417, %v583
        %v657 = vadd.f32 %v486, %v652
        %v658 = vld [vmem:[%s169] sm:$0xff]
        %v659 = vld [vmem:[%s169 + $0x8] sm:$0xf]
        %s660 = scalar_lea.vmem %s1, 24
        %v661 = vld [vmem:[%s660] sm:$0xff]
        %v664 = vcombine.high %v658, %v658
        %665 = vrot.lane.b32.xlu0 %v658, 110
        %v666 = vpop.permute.xlu0 %665
        %667 = vrot.lane.b32.xlu0 %v664, 110
        %v668 = vpop.permute.xlu0 %667
        %669 = vrot.lane.b32.xlu0 %v659, 110
        %v670 = vpop.permute.xlu0 %669
        %vm671 = vcmask 900096
        %v672 = vsel %vm671, %v666, %v668
        %v673 = vsel %vm671, %v668, %v670
        %v675 = vsel %vm187, %v661, 0
        %v677 = vsel %vm191, %v672, 0
        %v679 = vsel %vm191, %v673, 0
        %v681 = vsel %vm191, %v670, 0
        %683 = vmatprep.subr.mxu0 %v679
        %684 = vmatpush1.msra.mxu0 %v677
        %685 = vmatprep.subr.mxu0 0.0
        %686 = vmatpush1.msra.mxu0 0.0
        %687 = vmatprep.subr.mxu0 0.0
        %688 = vmatpush1.msra.mxu0 0.0
        %689 = vmatprep.subr.mxu0 0.0
        %690 = vmatpush1.msra.mxu0 0.0
        %691 = vmatprep.subr.mxu0 0.0
        %692 = vmatpush1.msra.mxu0 0.0
        %693 = vmatprep.subr.mxu0 0.0
        %694 = vmatpush1.msra.mxu0 0.0
        %695 = vmatprep.subr.mxu0 0.0
        %696 = vmatpush1.msra.mxu0 0.0
        %697 = vmatprep.subr.mxu0 0.0
        %698 = vmatpush1.msra.mxu0 0.0
        %699 = vmatprep.subr.mxu0 0.0
        %700 = vmatpush1.msra.mxu0 0.0
        %701 = vmatprep.subr.mxu0 0.0
        %702 = vmatpush1.msra.mxu0 0.0
        %703 = vmatprep.subr.mxu0 0.0
        %704 = vmatpush1.msra.mxu0 0.0
        %705 = vmatprep.subr.mxu0 0.0
        %706 = vmatpush1.msra.mxu0 0.0
        %707 = vmatprep.subr.mxu0 0.0
        %708 = vmatpush1.msra.mxu0 0.0
        %709 = vmatprep.subr.mxu0 0.0
        %710 = vmatpush1.msra.mxu0 0.0
        %711 = vmatprep.subr.mxu0 0.0
        %712 = vmatpush1.msra.mxu0 0.0
        %713 = vmatprep.subr.mxu0 0.0
        %714 = vmatpush1.msra.mxu0 0.0
        %715 = vmatprep.subr.mxu0 0.0
        %716 = vmatpush1.msra.mxu0 0.0
        %717 = vmatprep.subr.mxu0 0.0
        %718 = vmatpush1.msra.mxu0 0.0
        %719 = vmatprep.subr.mxu0 0.0
        %720 = vmatpush1.msra.mxu0 0.0
        %721 = vmatprep.subr.mxu0 0.0
        %722 = vmatpush1.msra.mxu0 0.0
        %723 = vmatprep.subr.mxu0 0.0
        %724 = vmatpush1.msra.mxu0 0.0
        %725 = vmatprep.subr.mxu0 0.0
        %726 = vmatpush1.msra.mxu0 0.0
        %727 = vmatprep.subr.mxu0 0.0
        %728 = vmatpush1.msra.mxu0 0.0
        %729 = vmatprep.subr.mxu0 0.0
        %730 = vmatpush1.msra.mxu0 0.0
        %731 = vmatprep.subr.mxu0 0.0
        %732 = vmatpush1.msra.mxu0 0.0
        %733 = vmatprep.subr.mxu0 0.0
        %734 = vmatpush1.msra.mxu0 0.0
        %735 = vmatprep.subr.mxu0 0.0
        %736 = vmatpush1.msra.mxu0 0.0
        %737 = vmatprep.subr.mxu0 0.0
        %738 = vmatpush1.msra.mxu0 0.0
        %739 = vmatprep.subr.mxu0 0.0
        %740 = vmatpush1.msra.mxu0 0.0
        %741 = vmatprep.subr.mxu0 0.0
        %742 = vmatpush1.msra.mxu0 0.0
        %743 = vmatprep.subr.mxu0 0.0
        %744 = vmatpush1.msra.mxu0 0.0
        %745 = vmatprep.subr.mxu0 0.0
        %746 = vmatpush1.msra.mxu0 0.0
        %747 = vmatprep.mubr.f32.mxu0 0.0
        %748 = vmatmul.mubr.f32.gmra.mrb[0].mxu0 %v675
        %v749 = vpop.f32.mrb[0].mxu0
        %v750 = vadd.f32 0.0, %v749
        %v751 = vpop.f32.mrb[0].mxu0
        %v752 = vadd.f32 0.0, %v751
        %753 = vdwg.mxu0
        %754 = vmatprep.subr.mxu0 0.0
        %755 = vmatpush1.msra.mxu0 %v681
        %756 = vmatprep.subr.mxu0 0.0
        %757 = vmatpush1.msra.mxu0 0.0
        %758 = vmatprep.subr.mxu0 0.0
        %759 = vmatpush1.msra.mxu0 0.0
        %760 = vmatprep.subr.mxu0 0.0
        %761 = vmatpush1.msra.mxu0 0.0
        %762 = vmatprep.subr.mxu0 0.0
        %763 = vmatpush1.msra.mxu0 0.0
        %764 = vmatprep.subr.mxu0 0.0
        %765 = vmatpush1.msra.mxu0 0.0
        %766 = vmatprep.subr.mxu0 0.0
        %767 = vmatpush1.msra.mxu0 0.0
        %768 = vmatprep.subr.mxu0 0.0
        %769 = vmatpush1.msra.mxu0 0.0
        %770 = vmatprep.subr.mxu0 0.0
        %771 = vmatpush1.msra.mxu0 0.0
        %772 = vmatprep.subr.mxu0 0.0
        %773 = vmatpush1.msra.mxu0 0.0
        %774 = vmatprep.subr.mxu0 0.0
        %775 = vmatpush1.msra.mxu0 0.0
        %776 = vmatprep.subr.mxu0 0.0
        %777 = vmatpush1.msra.mxu0 0.0
        %778 = vmatprep.subr.mxu0 0.0
        %779 = vmatpush1.msra.mxu0 0.0
        %780 = vmatprep.subr.mxu0 0.0
        %781 = vmatpush1.msra.mxu0 0.0
        %782 = vmatprep.subr.mxu0 0.0
        %783 = vmatpush1.msra.mxu0 0.0
        %784 = vmatprep.subr.mxu0 0.0
        %785 = vmatpush1.msra.mxu0 0.0
        %786 = vmatprep.subr.mxu0 0.0
        %787 = vmatpush1.msra.mxu0 0.0
        %788 = vmatprep.subr.mxu0 0.0
        %789 = vmatpush1.msra.mxu0 0.0
        %790 = vmatprep.subr.mxu0 0.0
        %791 = vmatpush1.msra.mxu0 0.0
        %792 = vmatprep.subr.mxu0 0.0
        %793 = vmatpush1.msra.mxu0 0.0
        %794 = vmatprep.subr.mxu0 0.0
        %795 = vmatpush1.msra.mxu0 0.0
        %796 = vmatprep.subr.mxu0 0.0
        %797 = vmatpush1.msra.mxu0 0.0
        %798 = vmatprep.subr.mxu0 0.0
        %799 = vmatpush1.msra.mxu0 0.0
        %800 = vmatprep.subr.mxu0 0.0
        %801 = vmatpush1.msra.mxu0 0.0
        %802 = vmatprep.subr.mxu0 0.0
        %803 = vmatpush1.msra.mxu0 0.0
        %804 = vmatprep.subr.mxu0 0.0
        %805 = vmatpush1.msra.mxu0 0.0
        %806 = vmatprep.subr.mxu0 0.0
        %807 = vmatpush1.msra.mxu0 0.0
        %808 = vmatprep.subr.mxu0 0.0
        %809 = vmatpush1.msra.mxu0 0.0
        %810 = vmatprep.subr.mxu0 0.0
        %811 = vmatpush1.msra.mxu0 0.0
        %812 = vmatprep.subr.mxu0 0.0
        %813 = vmatpush1.msra.mxu0 0.0
        %814 = vmatprep.subr.mxu0 0.0
        %815 = vmatpush1.msra.mxu0 0.0
        %816 = vmatprep.subr.mxu0 0.0
        %817 = vmatpush1.msra.mxu0 0.0
        %818 = vmatprep.mubr.f32.mxu0 0.0
        %819 = vmatmul.mubr.f32.gmra.mrb[0].mxu0 %v675
        %v820 = vpop.f32.mrb[0].mxu0
        %v821 = vadd.f32 0.0, %v820
        %v822 = vpop.f32.mrb[0].mxu0
        %823 = vdwg.mxu0
        %v824 = vadd.f32 %v655, %v750
        %v825 = vadd.f32 %v656, %v752
        %v826 = vadd.f32 %v657, %v821
        %v827 = vld [vmem:[%s169] sm:$0xff]
        %v828 = vld [vmem:[%s169 + $0x8] sm:$0xf]
        %s829 = scalar_lea.vmem %s1, 32
        %v830 = vld [vmem:[%s829] sm:$0xff]
        %v833 = vcombine.high %v827, %v827
        %834 = vrot.lane.b32.xlu0 %v827, 109
        %v835 = vpop.permute.xlu0 %834
        %836 = vrot.lane.b32.xlu0 %v833, 109
        %v837 = vpop.permute.xlu0 %836
        %838 = vrot.lane.b32.xlu0 %v828, 109
        %v839 = vpop.permute.xlu0 %838
        %vm840 = vcmask 891904
        %v841 = vsel %vm840, %v835, %v837
        %v842 = vsel %vm840, %v837, %v839
        %v844 = vsel %vm187, %v830, 0
        %v846 = vsel %vm191, %v841, 0
        %v848 = vsel %vm191, %v842, 0
        %v850 = vsel %vm191, %v839, 0
        %852 = vmatprep.subr.mxu0 %v848
        %853 = vmatpush1.msra.mxu0 %v846
        %854 = vmatprep.subr.mxu0 0.0
        %855 = vmatpush1.msra.mxu0 0.0
        %856 = vmatprep.subr.mxu0 0.0
        %857 = vmatpush1.msra.mxu0 0.0
        %858 = vmatprep.subr.mxu0 0.0
        %859 = vmatpush1.msra.mxu0 0.0
        %860 = vmatprep.subr.mxu0 0.0
        %861 = vmatpush1.msra.mxu0 0.0
        %862 = vmatprep.subr.mxu0 0.0
        %863 = vmatpush1.msra.mxu0 0.0
        %864 = vmatprep.subr.mxu0 0.0
        %865 = vmatpush1.msra.mxu0 0.0
        %866 = vmatprep.subr.mxu0 0.0
        %867 = vmatpush1.msra.mxu0 0.0
        %868 = vmatprep.subr.mxu0 0.0
        %869 = vmatpush1.msra.mxu0 0.0
        %870 = vmatprep.subr.mxu0 0.0
        %871 = vmatpush1.msra.mxu0 0.0
        %872 = vmatprep.subr.mxu0 0.0
        %873 = vmatpush1.msra.mxu0 0.0
        %874 = vmatprep.subr.mxu0 0.0
        %875 = vmatpush1.msra.mxu0 0.0
        %876 = vmatprep.subr.mxu0 0.0
        %877 = vmatpush1.msra.mxu0 0.0
        %878 = vmatprep.subr.mxu0 0.0
        %879 = vmatpush1.msra.mxu0 0.0
        %880 = vmatprep.subr.mxu0 0.0
        %881 = vmatpush1.msra.mxu0 0.0
        %882 = vmatprep.subr.mxu0 0.0
        %883 = vmatpush1.msra.mxu0 0.0
        %884 = vmatprep.subr.mxu0 0.0
        %885 = vmatpush1.msra.mxu0 0.0
        %886 = vmatprep.subr.mxu0 0.0
        %887 = vmatpush1.msra.mxu0 0.0
        %888 = vmatprep.subr.mxu0 0.0
        %889 = vmatpush1.msra.mxu0 0.0
        %890 = vmatprep.subr.mxu0 0.0
        %891 = vmatpush1.msra.mxu0 0.0
        %892 = vmatprep.subr.mxu0 0.0
        %893 = vmatpush1.msra.mxu0 0.0
        %894 = vmatprep.subr.mxu0 0.0
        %895 = vmatpush1.msra.mxu0 0.0
        %896 = vmatprep.subr.mxu0 0.0
        %897 = vmatpush1.msra.mxu0 0.0
        %898 = vmatprep.subr.mxu0 0.0
        %899 = vmatpush1.msra.mxu0 0.0
        %900 = vmatprep.subr.mxu0 0.0
        %901 = vmatpush1.msra.mxu0 0.0
        %902 = vmatprep.subr.mxu0 0.0
        %903 = vmatpush1.msra.mxu0 0.0
        %904 = vmatprep.subr.mxu0 0.0
        %905 = vmatpush1.msra.mxu0 0.0
        %906 = vmatprep.subr.mxu0 0.0
        %907 = vmatpush1.msra.mxu0 0.0
        %908 = vmatprep.subr.mxu0 0.0
        %909 = vmatpush1.msra.mxu0 0.0
        %910 = vmatprep.subr.mxu0 0.0
        %911 = vmatpush1.msra.mxu0 0.0
        %912 = vmatprep.subr.mxu0 0.0
        %913 = vmatpush1.msra.mxu0 0.0
        %914 = vmatprep.subr.mxu0 0.0
        %915 = vmatpush1.msra.mxu0 0.0
        %916 = vmatprep.mubr.f32.mxu0 0.0
        %917 = vmatmul.mubr.f32.gmra.mrb[0].mxu0 %v844
        %v918 = vpop.f32.mrb[0].mxu0
        %v919 = vadd.f32 0.0, %v918
        %v920 = vpop.f32.mrb[0].mxu0
        %v921 = vadd.f32 0.0, %v920
        %922 = vdwg.mxu0
        %923 = vmatprep.subr.mxu0 0.0
        %924 = vmatpush1.msra.mxu0 %v850
        %925 = vmatprep.subr.mxu0 0.0
        %926 = vmatpush1.msra.mxu0 0.0
        %927 = vmatprep.subr.mxu0 0.0
        %928 = vmatpush1.msra.mxu0 0.0
        %929 = vmatprep.subr.mxu0 0.0
        %930 = vmatpush1.msra.mxu0 0.0
        %931 = vmatprep.subr.mxu0 0.0
        %932 = vmatpush1.msra.mxu0 0.0
        %933 = vmatprep.subr.mxu0 0.0
        %934 = vmatpush1.msra.mxu0 0.0
        %935 = vmatprep.subr.mxu0 0.0
        %936 = vmatpush1.msra.mxu0 0.0
        %937 = vmatprep.subr.mxu0 0.0
        %938 = vmatpush1.msra.mxu0 0.0
        %939 = vmatprep.subr.mxu0 0.0
        %940 = vmatpush1.msra.mxu0 0.0
        %941 = vmatprep.subr.mxu0 0.0
        %942 = vmatpush1.msra.mxu0 0.0
        %943 = vmatprep.subr.mxu0 0.0
        %944 = vmatpush1.msra.mxu0 0.0
        %945 = vmatprep.subr.mxu0 0.0
        %946 = vmatpush1.msra.mxu0 0.0
        %947 = vmatprep.subr.mxu0 0.0
        %948 = vmatpush1.msra.mxu0 0.0
        %949 = vmatprep.subr.mxu0 0.0
        %950 = vmatpush1.msra.mxu0 0.0
        %951 = vmatprep.subr.mxu0 0.0
        %952 = vmatpush1.msra.mxu0 0.0
        %953 = vmatprep.subr.mxu0 0.0
        %954 = vmatpush1.msra.mxu0 0.0
        %955 = vmatprep.subr.mxu0 0.0
        %956 = vmatpush1.msra.mxu0 0.0
        %957 = vmatprep.subr.mxu0 0.0
        %958 = vmatpush1.msra.mxu0 0.0
        %959 = vmatprep.subr.mxu0 0.0
        %960 = vmatpush1.msra.mxu0 0.0
        %961 = vmatprep.subr.mxu0 0.0
        %962 = vmatpush1.msra.mxu0 0.0
        %963 = vmatprep.subr.mxu0 0.0
        %964 = vmatpush1.msra.mxu0 0.0
        %965 = vmatprep.subr.mxu0 0.0
        %966 = vmatpush1.msra.mxu0 0.0
        %967 = vmatprep.subr.mxu0 0.0
        %968 = vmatpush1.msra.mxu0 0.0
        %969 = vmatprep.subr.mxu0 0.0
        %970 = vmatpush1.msra.mxu0 0.0
        %971 = vmatprep.subr.mxu0 0.0
        %972 = vmatpush1.msra.mxu0 0.0
        %973 = vmatprep.subr.mxu0 0.0
        %974 = vmatpush1.msra.mxu0 0.0
        %975 = vmatprep.subr.mxu0 0.0
        %976 = vmatpush1.msra.mxu0 0.0
        %977 = vmatprep.subr.mxu0 0.0
        %978 = vmatpush1.msra.mxu0 0.0
        %979 = vmatprep.subr.mxu0 0.0
        %980 = vmatpush1.msra.mxu0 0.0
        %981 = vmatprep.subr.mxu0 0.0
        %982 = vmatpush1.msra.mxu0 0.0
        %983 = vmatprep.subr.mxu0 0.0
        %984 = vmatpush1.msra.mxu0 0.0
        %985 = vmatprep.subr.mxu0 0.0
        %986 = vmatpush1.msra.mxu0 0.0
        %987 = vmatprep.mubr.f32.mxu0 0.0
        %988 = vmatmul.mubr.f32.gmra.mrb[0].mxu0 %v844
        %v989 = vpop.f32.mrb[0].mxu0
        %v990 = vadd.f32 0.0, %v989
        %v991 = vpop.f32.mrb[0].mxu0
        %992 = vdwg.mxu0
        %v993 = vadd.f32 %v824, %v919
        %v994 = vadd.f32 %v825, %v921
        %v995 = vadd.f32 %v826, %v990
        %v996 = vld [vmem:[%s169] sm:$0xff]
        %v997 = vld [vmem:[%s169 + $0x8] sm:$0xf]
        %s998 = scalar_lea.vmem %s1, 40
        %v999 = vld [vmem:[%s998] sm:$0xff]
        %v1002 = vcombine.high %v996, %v996
        %1003 = vrot.lane.b32.xlu0 %v996, 108
        %v1004 = vpop.permute.xlu0 %1003
        %1005 = vrot.lane.b32.xlu0 %v1002, 108
        %v1006 = vpop.permute.xlu0 %1005
        %1007 = vrot.lane.b32.xlu0 %v997, 108
        %v1008 = vpop.permute.xlu0 %1007
        %vm1009 = vcmask 883712
        %v1010 = vsel %vm1009, %v1004, %v1006
        %v1011 = vsel %vm1009, %v1006, %v1008
        %v1013 = vsel %vm187, %v999, 0
        %v1015 = vsel %vm191, %v1010, 0
        %v1017 = vsel %vm191, %v1011, 0
        %v1019 = vsel %vm191, %v1008, 0
        %1021 = vmatprep.subr.mxu0 %v1017
        %1022 = vmatpush1.msra.mxu0 %v1015
        %1023 = vmatprep.subr.mxu0 0.0
        %1024 = vmatpush1.msra.mxu0 0.0
        %1025 = vmatprep.subr.mxu0 0.0
        %1026 = vmatpush1.msra.mxu0 0.0
        %1027 = vmatprep.subr.mxu0 0.0
        %1028 = vmatpush1.msra.mxu0 0.0
        %1029 = vmatprep.subr.mxu0 0.0
        %1030 = vmatpush1.msra.mxu0 0.0
        %1031 = vmatprep.subr.mxu0 0.0
        %1032 = vmatpush1.msra.mxu0 0.0
        %1033 = vmatprep.subr.mxu0 0.0
        %1034 = vmatpush1.msra.mxu0 0.0
        %1035 = vmatprep.subr.mxu0 0.0
        %1036 = vmatpush1.msra.mxu0 0.0
        %1037 = vmatprep.subr.mxu0 0.0
        %1038 = vmatpush1.msra.mxu0 0.0
        %1039 = vmatprep.subr.mxu0 0.0
        %1040 = vmatpush1.msra.mxu0 0.0
        %1041 = vmatprep.subr.mxu0 0.0
        %1042 = vmatpush1.msra.mxu0 0.0
        %1043 = vmatprep.subr.mxu0 0.0
        %1044 = vmatpush1.msra.mxu0 0.0
        %1045 = vmatprep.subr.mxu0 0.0
        %1046 = vmatpush1.msra.mxu0 0.0
        %1047 = vmatprep.subr.mxu0 0.0
        %1048 = vmatpush1.msra.mxu0 0.0
        %1049 = vmatprep.subr.mxu0 0.0
        %1050 = vmatpush1.msra.mxu0 0.0
        %1051 = vmatprep.subr.mxu0 0.0
        %1052 = vmatpush1.msra.mxu0 0.0
        %1053 = vmatprep.subr.mxu0 0.0
        %1054 = vmatpush1.msra.mxu0 0.0
        %1055 = vmatprep.subr.mxu0 0.0
        %1056 = vmatpush1.msra.mxu0 0.0
        %1057 = vmatprep.subr.mxu0 0.0
        %1058 = vmatpush1.msra.mxu0 0.0
        %1059 = vmatprep.subr.mxu0 0.0
        %1060 = vmatpush1.msra.mxu0 0.0
        %1061 = vmatprep.subr.mxu0 0.0
        %1062 = vmatpush1.msra.mxu0 0.0
        %1063 = vmatprep.subr.mxu0 0.0
        %1064 = vmatpush1.msra.mxu0 0.0
        %1065 = vmatprep.subr.mxu0 0.0
        %1066 = vmatpush1.msra.mxu0 0.0
        %1067 = vmatprep.subr.mxu0 0.0
        %1068 = vmatpush1.msra.mxu0 0.0
        %1069 = vmatprep.subr.mxu0 0.0
        %1070 = vmatpush1.msra.mxu0 0.0
        %1071 = vmatprep.subr.mxu0 0.0
        %1072 = vmatpush1.msra.mxu0 0.0
        %1073 = vmatprep.subr.mxu0 0.0
        %1074 = vmatpush1.msra.mxu0 0.0
        %1075 = vmatprep.subr.mxu0 0.0
        %1076 = vmatpush1.msra.mxu0 0.0
        %1077 = vmatprep.subr.mxu0 0.0
        %1078 = vmatpush1.msra.mxu0 0.0
        %1079 = vmatprep.subr.mxu0 0.0
        %1080 = vmatpush1.msra.mxu0 0.0
        %1081 = vmatprep.subr.mxu0 0.0
        %1082 = vmatpush1.msra.mxu0 0.0
        %1083 = vmatprep.subr.mxu0 0.0
        %1084 = vmatpush1.msra.mxu0 0.0
        %1085 = vmatprep.mubr.f32.mxu0 0.0
        %1086 = vmatmul.mubr.f32.gmra.mrb[0].mxu0 %v1013
        %v1087 = vpop.f32.mrb[0].mxu0
        %v1088 = vadd.f32 0.0, %v1087
        %v1089 = vpop.f32.mrb[0].mxu0
        %v1090 = vadd.f32 0.0, %v1089
        %1091 = vdwg.mxu0
        %1092 = vmatprep.subr.mxu0 0.0
        %1093 = vmatpush1.msra.mxu0 %v1019
        %1094 = vmatprep.subr.mxu0 0.0
        %1095 = vmatpush1.msra.mxu0 0.0
        %1096 = vmatprep.subr.mxu0 0.0
        %1097 = vmatpush1.msra.mxu0 0.0
        %1098 = vmatprep.subr.mxu0 0.0
        %1099 = vmatpush1.msra.mxu0 0.0
        %1100 = vmatprep.subr.mxu0 0.0
        %1101 = vmatpush1.msra.mxu0 0.0
        %1102 = vmatprep.subr.mxu0 0.0
        %1103 = vmatpush1.msra.mxu0 0.0
        %1104 = vmatprep.subr.mxu0 0.0
        %1105 = vmatpush1.msra.mxu0 0.0
        %1106 = vmatprep.subr.mxu0 0.0
        %1107 = vmatpush1.msra.mxu0 0.0
        %1108 = vmatprep.subr.mxu0 0.0
        %1109 = vmatpush1.msra.mxu0 0.0
        %1110 = vmatprep.subr.mxu0 0.0
        %1111 = vmatpush1.msra.mxu0 0.0
        %1112 = vmatprep.subr.mxu0 0.0
        %1113 = vmatpush1.msra.mxu0 0.0
        %1114 = vmatprep.subr.mxu0 0.0
        %1115 = vmatpush1.msra.mxu0 0.0
        %1116 = vmatprep.subr.mxu0 0.0
        %1117 = vmatpush1.msra.mxu0 0.0
        %1118 = vmatprep.subr.mxu0 0.0
        %1119 = vmatpush1.msra.mxu0 0.0
        %1120 = vmatprep.subr.mxu0 0.0
        %1121 = vmatpush1.msra.mxu0 0.0
        %1122 = vmatprep.subr.mxu0 0.0
        %1123 = vmatpush1.msra.mxu0 0.0
        %1124 = vmatprep.subr.mxu0 0.0
        %1125 = vmatpush1.msra.mxu0 0.0
        %1126 = vmatprep.subr.mxu0 0.0
        %1127 = vmatpush1.msra.mxu0 0.0
        %1128 = vmatprep.subr.mxu0 0.0
        %1129 = vmatpush1.msra.mxu0 0.0
        %1130 = vmatprep.subr.mxu0 0.0
        %1131 = vmatpush1.msra.mxu0 0.0
        %1132 = vmatprep.subr.mxu0 0.0
        %1133 = vmatpush1.msra.mxu0 0.0
        %1134 = vmatprep.subr.mxu0 0.0
        %1135 = vmatpush1.msra.mxu0 0.0
        %1136 = vmatprep.subr.mxu0 0.0
        %1137 = vmatpush1.msra.mxu0 0.0
        %1138 = vmatprep.subr.mxu0 0.0
        %1139 = vmatpush1.msra.mxu0 0.0
        %1140 = vmatprep.subr.mxu0 0.0
        %1141 = vmatpush1.msra.mxu0 0.0
        %1142 = vmatprep.subr.mxu0 0.0
        %1143 = vmatpush1.msra.mxu0 0.0
        %1144 = vmatprep.subr.mxu0 0.0
        %1145 = vmatpush1.msra.mxu0 0.0
        %1146 = vmatprep.subr.mxu0 0.0
        %1147 = vmatpush1.msra.mxu0 0.0
        %1148 = vmatprep.subr.mxu0 0.0
        %1149 = vmatpush1.msra.mxu0 0.0
        %1150 = vmatprep.subr.mxu0 0.0
        %1151 = vmatpush1.msra.mxu0 0.0
        %1152 = vmatprep.subr.mxu0 0.0
        %1153 = vmatpush1.msra.mxu0 0.0
        %1154 = vmatprep.subr.mxu0 0.0
        %1155 = vmatpush1.msra.mxu0 0.0
        %1156 = vmatprep.mubr.f32.mxu0 0.0
        %1157 = vmatmul.mubr.f32.gmra.mrb[0].mxu0 %v1013
        %v1158 = vpop.f32.mrb[0].mxu0
        %v1159 = vadd.f32 0.0, %v1158
        %v1160 = vpop.f32.mrb[0].mxu0
        %1161 = vdwg.mxu0
        %v1162 = vadd.f32 %v993, %v1088
        %v1163 = vadd.f32 %v994, %v1090
        %v1164 = vadd.f32 %v995, %v1159
        %v1165 = vld [vmem:[%s169] sm:$0xff]
        %v1166 = vld [vmem:[%s169 + $0x8] sm:$0xf]
        %s1167 = scalar_lea.vmem %s1, 48
        %v1168 = vld [vmem:[%s1167] sm:$0xff]
        %v1171 = vcombine.high %v1165, %v1165
        %1172 = vrot.lane.b32.xlu0 %v1165, 92
        %v1173 = vpop.permute.xlu0 %1172
        %1174 = vrot.lane.b32.xlu0 %v1171, 92
        %v1175 = vpop.permute.xlu0 %1174
        %1176 = vrot.lane.b32.xlu0 %v1166, 92
        %v1177 = vpop.permute.xlu0 %1176
        %vm1178 = vcmask 752640
        %v1179 = vsel %vm1178, %v1173, %v1175
        %v1180 = vsel %vm1178, %v1175, %v1177
        %v1182 = vsel %vm187, %v1168, 0
        %v1184 = vsel %vm191, %v1179, 0
        %v1186 = vsel %vm191, %v1180, 0
        %v1188 = vsel %vm191, %v1177, 0
        %1190 = vmatprep.subr.mxu0 %v1186
        %1191 = vmatpush1.msra.mxu0 %v1184
        %1192 = vmatprep.subr.mxu0 0.0
        %1193 = vmatpush1.msra.mxu0 0.0
        %1194 = vmatprep.subr.mxu0 0.0
        %1195 = vmatpush1.msra.mxu0 0.0
        %1196 = vmatprep.subr.mxu0 0.0
        %1197 = vmatpush1.msra.mxu0 0.0
        %1198 = vmatprep.subr.mxu0 0.0
        %1199 = vmatpush1.msra.mxu0 0.0
        %1200 = vmatprep.subr.mxu0 0.0
        %1201 = vmatpush1.msra.mxu0 0.0
        %1202 = vmatprep.subr.mxu0 0.0
        %1203 = vmatpush1.msra.mxu0 0.0
        %1204 = vmatprep.subr.mxu0 0.0
        %1205 = vmatpush1.msra.mxu0 0.0
        %1206 = vmatprep.subr.mxu0 0.0
        %1207 = vmatpush1.msra.mxu0 0.0
        %1208 = vmatprep.subr.mxu0 0.0
        %1209 = vmatpush1.msra.mxu0 0.0
        %1210 = vmatprep.subr.mxu0 0.0
        %1211 = vmatpush1.msra.mxu0 0.0
        %1212 = vmatprep.subr.mxu0 0.0
        %1213 = vmatpush1.msra.mxu0 0.0
        %1214 = vmatprep.subr.mxu0 0.0
        %1215 = vmatpush1.msra.mxu0 0.0
        %1216 = vmatprep.subr.mxu0 0.0
        %1217 = vmatpush1.msra.mxu0 0.0
        %1218 = vmatprep.subr.mxu0 0.0
        %1219 = vmatpush1.msra.mxu0 0.0
        %1220 = vmatprep.subr.mxu0 0.0
        %1221 = vmatpush1.msra.mxu0 0.0
        %1222 = vmatprep.subr.mxu0 0.0
        %1223 = vmatpush1.msra.mxu0 0.0
        %1224 = vmatprep.subr.mxu0 0.0
        %1225 = vmatpush1.msra.mxu0 0.0
        %1226 = vmatprep.subr.mxu0 0.0
        %1227 = vmatpush1.msra.mxu0 0.0
        %1228 = vmatprep.subr.mxu0 0.0
        %1229 = vmatpush1.msra.mxu0 0.0
        %1230 = vmatprep.subr.mxu0 0.0
        %1231 = vmatpush1.msra.mxu0 0.0
        %1232 = vmatprep.subr.mxu0 0.0
        %1233 = vmatpush1.msra.mxu0 0.0
        %1234 = vmatprep.subr.mxu0 0.0
        %1235 = vmatpush1.msra.mxu0 0.0
        %1236 = vmatprep.subr.mxu0 0.0
        %1237 = vmatpush1.msra.mxu0 0.0
        %1238 = vmatprep.subr.mxu0 0.0
        %1239 = vmatpush1.msra.mxu0 0.0
        %1240 = vmatprep.subr.mxu0 0.0
        %1241 = vmatpush1.msra.mxu0 0.0
        %1242 = vmatprep.subr.mxu0 0.0
        %1243 = vmatpush1.msra.mxu0 0.0
        %1244 = vmatprep.subr.mxu0 0.0
        %1245 = vmatpush1.msra.mxu0 0.0
        %1246 = vmatprep.subr.mxu0 0.0
        %1247 = vmatpush1.msra.mxu0 0.0
        %1248 = vmatprep.subr.mxu0 0.0
        %1249 = vmatpush1.msra.mxu0 0.0
        %1250 = vmatprep.subr.mxu0 0.0
        %1251 = vmatpush1.msra.mxu0 0.0
        %1252 = vmatprep.subr.mxu0 0.0
        %1253 = vmatpush1.msra.mxu0 0.0
        %1254 = vmatprep.mubr.f32.mxu0 0.0
        %1255 = vmatmul.mubr.f32.gmra.mrb[0].mxu0 %v1182
        %v1256 = vpop.f32.mrb[0].mxu0
        %v1257 = vadd.f32 0.0, %v1256
        %v1258 = vpop.f32.mrb[0].mxu0
        %v1259 = vadd.f32 0.0, %v1258
        %1260 = vdwg.mxu0
        %1261 = vmatprep.subr.mxu0 0.0
        %1262 = vmatpush1.msra.mxu0 %v1188
        %1263 = vmatprep.subr.mxu0 0.0
        %1264 = vmatpush1.msra.mxu0 0.0
        %1265 = vmatprep.subr.mxu0 0.0
        %1266 = vmatpush1.msra.mxu0 0.0
        %1267 = vmatprep.subr.mxu0 0.0
        %1268 = vmatpush1.msra.mxu0 0.0
        %1269 = vmatprep.subr.mxu0 0.0
        %1270 = vmatpush1.msra.mxu0 0.0
        %1271 = vmatprep.subr.mxu0 0.0
        %1272 = vmatpush1.msra.mxu0 0.0
        %1273 = vmatprep.subr.mxu0 0.0
        %1274 = vmatpush1.msra.mxu0 0.0
        %1275 = vmatprep.subr.mxu0 0.0
        %1276 = vmatpush1.msra.mxu0 0.0
        %1277 = vmatprep.subr.mxu0 0.0
        %1278 = vmatpush1.msra.mxu0 0.0
        %1279 = vmatprep.subr.mxu0 0.0
        %1280 = vmatpush1.msra.mxu0 0.0
        %1281 = vmatprep.subr.mxu0 0.0
        %1282 = vmatpush1.msra.mxu0 0.0
        %1283 = vmatprep.subr.mxu0 0.0
        %1284 = vmatpush1.msra.mxu0 0.0
        %1285 = vmatprep.subr.mxu0 0.0
        %1286 = vmatpush1.msra.mxu0 0.0
        %1287 = vmatprep.subr.mxu0 0.0
        %1288 = vmatpush1.msra.mxu0 0.0
        %1289 = vmatprep.subr.mxu0 0.0
        %1290 = vmatpush1.msra.mxu0 0.0
        %1291 = vmatprep.subr.mxu0 0.0
        %1292 = vmatpush1.msra.mxu0 0.0
        %1293 = vmatprep.subr.mxu0 0.0
        %1294 = vmatpush1.msra.mxu0 0.0
        %1295 = vmatprep.subr.mxu0 0.0
        %1296 = vmatpush1.msra.mxu0 0.0
        %1297 = vmatprep.subr.mxu0 0.0
        %1298 = vmatpush1.msra.mxu0 0.0
        %1299 = vmatprep.subr.mxu0 0.0
        %1300 = vmatpush1.msra.mxu0 0.0
        %1301 = vmatprep.subr.mxu0 0.0
        %1302 = vmatpush1.msra.mxu0 0.0
        %1303 = vmatprep.subr.mxu0 0.0
        %1304 = vmatpush1.msra.mxu0 0.0
        %1305 = vmatprep.subr.mxu0 0.0
        %1306 = vmatpush1.msra.mxu0 0.0
        %1307 = vmatprep.subr.mxu0 0.0
        %1308 = vmatpush1.msra.mxu0 0.0
        %1309 = vmatprep.subr.mxu0 0.0
        %1310 = vmatpush1.msra.mxu0 0.0
        %1311 = vmatprep.subr.mxu0 0.0
        %1312 = vmatpush1.msra.mxu0 0.0
        %1313 = vmatprep.subr.mxu0 0.0
        %1314 = vmatpush1.msra.mxu0 0.0
        %1315 = vmatprep.subr.mxu0 0.0
        %1316 = vmatpush1.msra.mxu0 0.0
        %1317 = vmatprep.subr.mxu0 0.0
        %1318 = vmatpush1.msra.mxu0 0.0
        %1319 = vmatprep.subr.mxu0 0.0
        %1320 = vmatpush1.msra.mxu0 0.0
        %1321 = vmatprep.subr.mxu0 0.0
        %1322 = vmatpush1.msra.mxu0 0.0
        %1323 = vmatprep.subr.mxu0 0.0
        %1324 = vmatpush1.msra.mxu0 0.0
        %1325 = vmatprep.mubr.f32.mxu0 0.0
        %1326 = vmatmul.mubr.f32.gmra.mrb[0].mxu0 %v1182
        %v1327 = vpop.f32.mrb[0].mxu0
        %v1328 = vadd.f32 0.0, %v1327
        %v1329 = vpop.f32.mrb[0].mxu0
        %1330 = vdwg.mxu0
        %v1331 = vadd.f32 %v1162, %v1257
        %v1332 = vadd.f32 %v1163, %v1259
        %v1333 = vadd.f32 %v1164, %v1328
        %v1334 = vld [vmem:[%s169] sm:$0xff]
        %v1335 = vld [vmem:[%s169 + $0x8] sm:$0xf]
        %s1336 = scalar_lea.vmem %s1, 56
        %v1337 = vld [vmem:[%s1336] sm:$0xff]
        %v1340 = vcombine.high %v1334, %v1334
        %1341 = vrot.lane.b32.xlu0 %v1334, 91
        %v1342 = vpop.permute.xlu0 %1341
        %1343 = vrot.lane.b32.xlu0 %v1340, 91
        %v1344 = vpop.permute.xlu0 %1343
        %1345 = vrot.lane.b32.xlu0 %v1335, 91
        %v1346 = vpop.permute.xlu0 %1345
        %vm1347 = vcmask 744448
        %v1348 = vsel %vm1347, %v1342, %v1344
        %v1349 = vsel %vm1347, %v1344, %v1346
        %v1351 = vsel %vm187, %v1337, 0
        %v1353 = vsel %vm191, %v1348, 0
        %v1355 = vsel %vm191, %v1349, 0
        %v1357 = vsel %vm191, %v1346, 0
        %1359 = vmatprep.subr.mxu0 %v1355
        %1360 = vmatpush1.msra.mxu0 %v1353
        %1361 = vmatprep.subr.mxu0 0.0
        %1362 = vmatpush1.msra.mxu0 0.0
        %1363 = vmatprep.subr.mxu0 0.0
        %1364 = vmatpush1.msra.mxu0 0.0
        %1365 = vmatprep.subr.mxu0 0.0
        %1366 = vmatpush1.msra.mxu0 0.0
        %1367 = vmatprep.subr.mxu0 0.0
        %1368 = vmatpush1.msra.mxu0 0.0
        %1369 = vmatprep.subr.mxu0 0.0
        %1370 = vmatpush1.msra.mxu0 0.0
        %1371 = vmatprep.subr.mxu0 0.0
        %1372 = vmatpush1.msra.mxu0 0.0
        %1373 = vmatprep.subr.mxu0 0.0
        %1374 = vmatpush1.msra.mxu0 0.0
        %1375 = vmatprep.subr.mxu0 0.0
        %1376 = vmatpush1.msra.mxu0 0.0
        %1377 = vmatprep.subr.mxu0 0.0
        %1378 = vmatpush1.msra.mxu0 0.0
        %1379 = vmatprep.subr.mxu0 0.0
        %1380 = vmatpush1.msra.mxu0 0.0
        %1381 = vmatprep.subr.mxu0 0.0
        %1382 = vmatpush1.msra.mxu0 0.0
        %1383 = vmatprep.subr.mxu0 0.0
        %1384 = vmatpush1.msra.mxu0 0.0
        %1385 = vmatprep.subr.mxu0 0.0
        %1386 = vmatpush1.msra.mxu0 0.0
        %1387 = vmatprep.subr.mxu0 0.0
        %1388 = vmatpush1.msra.mxu0 0.0
        %1389 = vmatprep.subr.mxu0 0.0
        %1390 = vmatpush1.msra.mxu0 0.0
        %1391 = vmatprep.subr.mxu0 0.0
        %1392 = vmatpush1.msra.mxu0 0.0
        %1393 = vmatprep.subr.mxu0 0.0
        %1394 = vmatpush1.msra.mxu0 0.0
        %1395 = vmatprep.subr.mxu0 0.0
        %1396 = vmatpush1.msra.mxu0 0.0
        %1397 = vmatprep.subr.mxu0 0.0
        %1398 = vmatpush1.msra.mxu0 0.0
        %1399 = vmatprep.subr.mxu0 0.0
        %1400 = vmatpush1.msra.mxu0 0.0
        %1401 = vmatprep.subr.mxu0 0.0
        %1402 = vmatpush1.msra.mxu0 0.0
        %1403 = vmatprep.subr.mxu0 0.0
        %1404 = vmatpush1.msra.mxu0 0.0
        %1405 = vmatprep.subr.mxu0 0.0
        %1406 = vmatpush1.msra.mxu0 0.0
        %1407 = vmatprep.subr.mxu0 0.0
        %1408 = vmatpush1.msra.mxu0 0.0
        %1409 = vmatprep.subr.mxu0 0.0
        %1410 = vmatpush1.msra.mxu0 0.0
        %1411 = vmatprep.subr.mxu0 0.0
        %1412 = vmatpush1.msra.mxu0 0.0
        %1413 = vmatprep.subr.mxu0 0.0
        %1414 = vmatpush1.msra.mxu0 0.0
        %1415 = vmatprep.subr.mxu0 0.0
        %1416 = vmatpush1.msra.mxu0 0.0
        %1417 = vmatprep.subr.mxu0 0.0
        %1418 = vmatpush1.msra.mxu0 0.0
        %1419 = vmatprep.subr.mxu0 0.0
        %1420 = vmatpush1.msra.mxu0 0.0
        %1421 = vmatprep.subr.mxu0 0.0
        %1422 = vmatpush1.msra.mxu0 0.0
        %1423 = vmatprep.mubr.f32.mxu0 0.0
        %1424 = vmatmul.mubr.f32.gmra.mrb[0].mxu0 %v1351
        %v1425 = vpop.f32.mrb[0].mxu0
        %v1426 = vadd.f32 0.0, %v1425
        %v1427 = vpop.f32.mrb[0].mxu0
        %v1428 = vadd.f32 0.0, %v1427
        %1429 = vdwg.mxu0
        %1430 = vmatprep.subr.mxu0 0.0
        %1431 = vmatpush1.msra.mxu0 %v1357
        %1432 = vmatprep.subr.mxu0 0.0
        %1433 = vmatpush1.msra.mxu0 0.0
        %1434 = vmatprep.subr.mxu0 0.0
        %1435 = vmatpush1.msra.mxu0 0.0
        %1436 = vmatprep.subr.mxu0 0.0
        %1437 = vmatpush1.msra.mxu0 0.0
        %1438 = vmatprep.subr.mxu0 0.0
        %1439 = vmatpush1.msra.mxu0 0.0
        %1440 = vmatprep.subr.mxu0 0.0
        %1441 = vmatpush1.msra.mxu0 0.0
        %1442 = vmatprep.subr.mxu0 0.0
        %1443 = vmatpush1.msra.mxu0 0.0
        %1444 = vmatprep.subr.mxu0 0.0
        %1445 = vmatpush1.msra.mxu0 0.0
        %1446 = vmatprep.subr.mxu0 0.0
        %1447 = vmatpush1.msra.mxu0 0.0
        %1448 = vmatprep.subr.mxu0 0.0
        %1449 = vmatpush1.msra.mxu0 0.0
        %1450 = vmatprep.subr.mxu0 0.0
        %1451 = vmatpush1.msra.mxu0 0.0
        %1452 = vmatprep.subr.mxu0 0.0
        %1453 = vmatpush1.msra.mxu0 0.0
        %1454 = vmatprep.subr.mxu0 0.0
        %1455 = vmatpush1.msra.mxu0 0.0
        %1456 = vmatprep.subr.mxu0 0.0
        %1457 = vmatpush1.msra.mxu0 0.0
        %1458 = vmatprep.subr.mxu0 0.0
        %1459 = vmatpush1.msra.mxu0 0.0
        %1460 = vmatprep.subr.mxu0 0.0
        %1461 = vmatpush1.msra.mxu0 0.0
        %1462 = vmatprep.subr.mxu0 0.0
        %1463 = vmatpush1.msra.mxu0 0.0
        %1464 = vmatprep.subr.mxu0 0.0
        %1465 = vmatpush1.msra.mxu0 0.0
        %1466 = vmatprep.subr.mxu0 0.0
        %1467 = vmatpush1.msra.mxu0 0.0
        %1468 = vmatprep.subr.mxu0 0.0
        %1469 = vmatpush1.msra.mxu0 0.0
        %1470 = vmatprep.subr.mxu0 0.0
        %1471 = vmatpush1.msra.mxu0 0.0
        %1472 = vmatprep.subr.mxu0 0.0
        %1473 = vmatpush1.msra.mxu0 0.0
        %1474 = vmatprep.subr.mxu0 0.0
        %1475 = vmatpush1.msra.mxu0 0.0
        %1476 = vmatprep.subr.mxu0 0.0
        %1477 = vmatpush1.msra.mxu0 0.0
        %1478 = vmatprep.subr.mxu0 0.0
        %1479 = vmatpush1.msra.mxu0 0.0
        %1480 = vmatprep.subr.mxu0 0.0
        %1481 = vmatpush1.msra.mxu0 0.0
        %1482 = vmatprep.subr.mxu0 0.0
        %1483 = vmatpush1.msra.mxu0 0.0
        %1484 = vmatprep.subr.mxu0 0.0
        %1485 = vmatpush1.msra.mxu0 0.0
        %1486 = vmatprep.subr.mxu0 0.0
        %1487 = vmatpush1.msra.mxu0 0.0
        %1488 = vmatprep.subr.mxu0 0.0
        %1489 = vmatpush1.msra.mxu0 0.0
        %1490 = vmatprep.subr.mxu0 0.0
        %1491 = vmatpush1.msra.mxu0 0.0
        %1492 = vmatprep.subr.mxu0 0.0
        %1493 = vmatpush1.msra.mxu0 0.0
        %1494 = vmatprep.mubr.f32.mxu0 0.0
        %1495 = vmatmul.mubr.f32.gmra.mrb[0].mxu0 %v1351
        %v1496 = vpop.f32.mrb[0].mxu0
        %v1497 = vadd.f32 0.0, %v1496
        %v1498 = vpop.f32.mrb[0].mxu0
        %1499 = vdwg.mxu0
        %v1500 = vadd.f32 %v1331, %v1426
        %v1501 = vadd.f32 %v1332, %v1428
        %v1502 = vadd.f32 %v1333, %v1497
        %v1503 = vld [vmem:[%s169] sm:$0xff]
        %v1504 = vld [vmem:[%s169 + $0x8] sm:$0xf]
        %s1505 = scalar_lea.vmem %s1, 64
        %v1506 = vld [vmem:[%s1505] sm:$0xff]
        %v1509 = vcombine.high %v1503, %v1503
        %1510 = vrot.lane.b32.xlu0 %v1503, 90
        %v1511 = vpop.permute.xlu0 %1510
        %1512 = vrot.lane.b32.xlu0 %v1509, 90
        %v1513 = vpop.permute.xlu0 %1512
        %1514 = vrot.lane.b32.xlu0 %v1504, 90
        %v1515 = vpop.permute.xlu0 %1514
        %vm1516 = vcmask 736256
        %v1517 = vsel %vm1516, %v1511, %v1513
        %v1518 = vsel %vm1516, %v1513, %v1515
        %v1520 = vsel %vm187, %v1506, 0
        %v1522 = vsel %vm191, %v1517, 0
        %v1524 = vsel %vm191, %v1518, 0
        %v1526 = vsel %vm191, %v1515, 0
        %1528 = vmatprep.subr.mxu0 %v1524
        %1529 = vmatpush1.msra.mxu0 %v1522
        %1530 = vmatprep.subr.mxu0 0.0
        %1531 = vmatpush1.msra.mxu0 0.0
        %1532 = vmatprep.subr.mxu0 0.0
        %1533 = vmatpush1.msra.mxu0 0.0
        %1534 = vmatprep.subr.mxu0 0.0
        %1535 = vmatpush1.msra.mxu0 0.0
        %1536 = vmatprep.subr.mxu0 0.0
        %1537 = vmatpush1.msra.mxu0 0.0
        %1538 = vmatprep.subr.mxu0 0.0
        %1539 = vmatpush1.msra.mxu0 0.0
        %1540 = vmatprep.subr.mxu0 0.0
        %1541 = vmatpush1.msra.mxu0 0.0
        %1542 = vmatprep.subr.mxu0 0.0
        %1543 = vmatpush1.msra.mxu0 0.0
        %1544 = vmatprep.subr.mxu0 0.0
        %1545 = vmatpush1.msra.mxu0 0.0
        %1546 = vmatprep.subr.mxu0 0.0
        %1547 = vmatpush1.msra.mxu0 0.0
        %1548 = vmatprep.subr.mxu0 0.0
        %1549 = vmatpush1.msra.mxu0 0.0
        %1550 = vmatprep.subr.mxu0 0.0
        %1551 = vmatpush1.msra.mxu0 0.0
        %1552 = vmatprep.subr.mxu0 0.0
        %1553 = vmatpush1.msra.mxu0 0.0
        %1554 = vmatprep.subr.mxu0 0.0
        %1555 = vmatpush1.msra.mxu0 0.0
        %1556 = vmatprep.subr.mxu0 0.0
        %1557 = vmatpush1.msra.mxu0 0.0
        %1558 = vmatprep.subr.mxu0 0.0
        %1559 = vmatpush1.msra.mxu0 0.0
        %1560 = vmatprep.subr.mxu0 0.0
        %1561 = vmatpush1.msra.mxu0 0.0
        %1562 = vmatprep.subr.mxu0 0.0
        %1563 = vmatpush1.msra.mxu0 0.0
        %1564 = vmatprep.subr.mxu0 0.0
        %1565 = vmatpush1.msra.mxu0 0.0
        %1566 = vmatprep.subr.mxu0 0.0
        %1567 = vmatpush1.msra.mxu0 0.0
        %1568 = vmatprep.subr.mxu0 0.0
        %1569 = vmatpush1.msra.mxu0 0.0
        %1570 = vmatprep.subr.mxu0 0.0
        %1571 = vmatpush1.msra.mxu0 0.0
        %1572 = vmatprep.subr.mxu0 0.0
        %1573 = vmatpush1.msra.mxu0 0.0
        %1574 = vmatprep.subr.mxu0 0.0
        %1575 = vmatpush1.msra.mxu0 0.0
        %1576 = vmatprep.subr.mxu0 0.0
        %1577 = vmatpush1.msra.mxu0 0.0
        %1578 = vmatprep.subr.mxu0 0.0
        %1579 = vmatpush1.msra.mxu0 0.0
        %1580 = vmatprep.subr.mxu0 0.0
        %1581 = vmatpush1.msra.mxu0 0.0
        %1582 = vmatprep.subr.mxu0 0.0
        %1583 = vmatpush1.msra.mxu0 0.0
        %1584 = vmatprep.subr.mxu0 0.0
        %1585 = vmatpush1.msra.mxu0 0.0
        %1586 = vmatprep.subr.mxu0 0.0
        %1587 = vmatpush1.msra.mxu0 0.0
        %1588 = vmatprep.subr.mxu0 0.0
        %1589 = vmatpush1.msra.mxu0 0.0
        %1590 = vmatprep.subr.mxu0 0.0
        %1591 = vmatpush1.msra.mxu0 0.0
        %1592 = vmatprep.mubr.f32.mxu0 0.0
        %1593 = vmatmul.mubr.f32.gmra.mrb[0].mxu0 %v1520
        %v1594 = vpop.f32.mrb[0].mxu0
        %v1595 = vadd.f32 0.0, %v1594
        %v1596 = vpop.f32.mrb[0].mxu0
        %v1597 = vadd.f32 0.0, %v1596
        %1598 = vdwg.mxu0
        %1599 = vmatprep.subr.mxu0 0.0
        %1600 = vmatpush1.msra.mxu0 %v1526
        %1601 = vmatprep.subr.mxu0 0.0
        %1602 = vmatpush1.msra.mxu0 0.0
        %1603 = vmatprep.subr.mxu0 0.0
        %1604 = vmatpush1.msra.mxu0 0.0
        %1605 = vmatprep.subr.mxu0 0.0
        %1606 = vmatpush1.msra.mxu0 0.0
        %1607 = vmatprep.subr.mxu0 0.0
        %1608 = vmatpush1.msra.mxu0 0.0
        %1609 = vmatprep.subr.mxu0 0.0
        %1610 = vmatpush1.msra.mxu0 0.0
        %1611 = vmatprep.subr.mxu0 0.0
        %1612 = vmatpush1.msra.mxu0 0.0
        %1613 = vmatprep.subr.mxu0 0.0
        %1614 = vmatpush1.msra.mxu0 0.0
        %1615 = vmatprep.subr.mxu0 0.0
        %1616 = vmatpush1.msra.mxu0 0.0
        %1617 = vmatprep.subr.mxu0 0.0
        %1618 = vmatpush1.msra.mxu0 0.0
        %1619 = vmatprep.subr.mxu0 0.0
        %1620 = vmatpush1.msra.mxu0 0.0
        %1621 = vmatprep.subr.mxu0 0.0
        %1622 = vmatpush1.msra.mxu0 0.0
        %1623 = vmatprep.subr.mxu0 0.0
        %1624 = vmatpush1.msra.mxu0 0.0
        %1625 = vmatprep.subr.mxu0 0.0
        %1626 = vmatpush1.msra.mxu0 0.0
        %1627 = vmatprep.subr.mxu0 0.0
        %1628 = vmatpush1.msra.mxu0 0.0
        %1629 = vmatprep.subr.mxu0 0.0
        %1630 = vmatpush1.msra.mxu0 0.0
        %1631 = vmatprep.subr.mxu0 0.0
        %1632 = vmatpush1.msra.mxu0 0.0
        %1633 = vmatprep.subr.mxu0 0.0
        %1634 = vmatpush1.msra.mxu0 0.0
        %1635 = vmatprep.subr.mxu0 0.0
        %1636 = vmatpush1.msra.mxu0 0.0
        %1637 = vmatprep.subr.mxu0 0.0
        %1638 = vmatpush1.msra.mxu0 0.0
        %1639 = vmatprep.subr.mxu0 0.0
        %1640 = vmatpush1.msra.mxu0 0.0
        %1641 = vmatprep.subr.mxu0 0.0
        %1642 = vmatpush1.msra.mxu0 0.0
        %1643 = vmatprep.subr.mxu0 0.0
        %1644 = vmatpush1.msra.mxu0 0.0
        %1645 = vmatprep.subr.mxu0 0.0
        %1646 = vmatpush1.msra.mxu0 0.0
        %1647 = vmatprep.subr.mxu0 0.0
        %1648 = vmatpush1.msra.mxu0 0.0
        %1649 = vmatprep.subr.mxu0 0.0
        %1650 = vmatpush1.msra.mxu0 0.0
        %1651 = vmatprep.subr.mxu0 0.0
        %1652 = vmatpush1.msra.mxu0 0.0
        %1653 = vmatprep.subr.mxu0 0.0
        %1654 = vmatpush1.msra.mxu0 0.0
        %1655 = vmatprep.subr.mxu0 0.0
        %1656 = vmatpush1.msra.mxu0 0.0
        %1657 = vmatprep.subr.mxu0 0.0
        %1658 = vmatpush1.msra.mxu0 0.0
        %1659 = vmatprep.subr.mxu0 0.0
        %1660 = vmatpush1.msra.mxu0 0.0
        %1661 = vmatprep.subr.mxu0 0.0
        %1662 = vmatpush1.msra.mxu0 0.0
        %1663 = vmatprep.mubr.f32.mxu0 0.0
        %1664 = vmatmul.mubr.f32.gmra.mrb[0].mxu0 %v1520
        %v1665 = vpop.f32.mrb[0].mxu0
        %v1666 = vadd.f32 0.0, %v1665
        %v1667 = vpop.f32.mrb[0].mxu0
        %1668 = vdwg.mxu0
        %v1669 = vadd.f32 %v1500, %v1595
        %v1670 = vadd.f32 %v1501, %v1597
        %v1671 = vadd.f32 %v1502, %v1666
        %1672 = vst [vmem:[%s160] sm:$0xff] %v1669
        %1673 = vst [vmem:[%s160 + $0x8] sm:$0xff] %v1670
        %vm1674 = vcmask 261120
        %1675 = vst.msk [vmem:[%s160 + $0x10] sm:$0xff] %vm1674, %v1671
        %s1676 = sand.u32 %s87, 1
        %s1677 = scalar_lea.sflag [#allocation3], %s1676
        %s1678 = sand.u32 %s87, 1
        %s1679 = smul.addr %s1678, 24
        %s1680 = scalar_lea.vmem [#allocation2], %s1679
        // Predicated region
        $region29: #{tpu_custom_call.1} parent=27 // pred_check
          %p1681 = pneg %p97
        $region30: #{tpu_custom_call.1} parent=27 // pred_check_branch
          %1683 = sbr.rel (%p1681) target = $region32
        $region31: #{tpu_custom_call.1} parent=27 // pred_region
          %s1685 = ssub.s32 384, 384
          %1686 = vsyncadd %s1677, %s1685
          %s1687 = smul.addr %s21, 3
          %s1688 = smul.addr %s20, 3
          %s1689 = sadd.s32 %s1687, %s1688
          %s1690 = smul.addr %s1689, 128
          %s1691 = scalar_lea.hbm %s2, %s1690
          %s1693 = sshll.u32 %s1680, 4
          %s1694 = int_to_ptr.vmem [resolvable:$true] %s1693
          %1696 = dma.vmem_to_hbm [thread:$0]  %s1694, 384, %s1691, %s1677
        $region32: #{tpu_custom_call.1} parent=27 // pred_fallthru
          _
      $region28: #{tpu_custom_call.1} parent=5 // pred_fallthru
        _
      %p1697 = scmp.le.s32.totalorder 2, %s11
      // Predicated region
      $region33: #{tpu_custom_call.1} parent=5 // pred_check
        %p1698 = pneg %p1697
      $region34: #{tpu_custom_call.1} parent=5 // pred_check_branch
        %1700 = sbr.rel (%p1698) target = $region36
      $region35: #{tpu_custom_call.1} parent=5 // pred_region
        %s1701 = ssub.s32 %s11, 2
        // Predicated region
        $region37: #{tpu_custom_call.1} parent=35 // pred_check
          %p1702 = pneg %p103
        $region38: #{tpu_custom_call.1} parent=35 // pred_check_branch
          %1704 = sbr.rel (%p1702) target = $region40
        $region39: #{tpu_custom_call.1} parent=35 // pred_region
          %s1705 = sand.u32 %s88, 1
          %s1706 = scalar_lea.sflag [#allocation3], %s1705
          %s1707 = sand.u32 %s88, 1
          %s1708 = smul.addr %s1707, 24
          %s1709 = scalar_lea.vmem [#allocation2], %s1708
          %1710 = dma.done %s1706, 384
        $region40: #{tpu_custom_call.1} parent=35 // pred_fallthru
          _
      $region36: #{tpu_custom_call.1} parent=5 // pred_fallthru
        _
    $region6: #{tpu_custom_call.1} parent=1 // loop_footer
      %s15 = sadd.s32 1, %s11
    $region7: #{tpu_custom_call.1} parent=1 // loop_footer_branch
      %10 = sbr.rel target = $region3
    $region8: #{tpu_custom_call.1} parent=1 // loop_exit
      _
    %1711 = vsyncpa [#allocation3], 1
    %s1712 = scalar_lea.sflag [#allocation3], 1
    %1713 = vsyncpa %s1712, 1

</llo_original>
